<compile_context>
chip_gen: v7x
topology: tpu7x:2x2x1
jax: 0.10.0
libtpu: 0.0.40
codegen_flags: <defaults>
</compile_context>

<pallas_src>
import functools

import jax
import jax.numpy as jnp
from jax.experimental import pallas as pl
from jax.experimental.pallas import tpu as pltpu

HEAD_PAD = 128  # lane width of the fused (actor || critic) head matmul


def _round_up(x, m):
    return ((x + m - 1) // m) * m


def actor_critic_kernel(
    x_ref,
    w1_ref, b1_ref,
    w2_ref, b2_ref,
    w3_ref, b3_ref,
    wh_ref, bh_ref,
    out_ref,
    *,
    action_size: int,
    head_out: int,
):
    # Shared trunk: (Linear -> ReLU) x 3.  bf16 MXU operands, f32 accumulation.
    x = x_ref[...]
    h = jnp.dot(x, w1_ref[...], preferred_element_type=jnp.float32) + b1_ref[...]
    h = jnp.maximum(h, 0.0).astype(jnp.bfloat16)
    h = jnp.dot(h, w2_ref[...], preferred_element_type=jnp.float32) + b2_ref[...]
    h = jnp.maximum(h, 0.0).astype(jnp.bfloat16)
    h = jnp.dot(h, w3_ref[...], preferred_element_type=jnp.float32) + b3_ref[...]
    h = jnp.maximum(h, 0.0).astype(jnp.bfloat16)

    # Fused actor+critic head: one lane-dense (128 -> 128) matmul.
    #   lanes [0, A)  -> actor logits
    #   lane  A       -> critic value
    #   lanes > A     -> zero padding
    head = jnp.dot(h, wh_ref[...], preferred_element_type=jnp.float32) + bh_ref[...]

    lane = jax.lax.broadcasted_iota(jnp.int32, head.shape, dimension=1)
    is_logit = lane < action_size
    is_value = lane == action_size

    # Softmax over the logit lanes only (padding lanes -> -inf -> exp = 0).
    logits = jnp.where(is_logit, head, -jnp.inf)
    m = jnp.max(logits, axis=-1, keepdims=True)
    e = jnp.exp(logits - m)
    denom = jnp.sum(e, axis=-1, keepdims=True)
    inv = 1.0 / denom            # exact reciprocal of a (tile_b, 1) column: cheap,
    probs = e * inv              # and probs sum to 1 for downstream samplers.

    # probs is already 0 on the value/padding lanes; one select packs the value.
    packed = jnp.where(is_value, head, probs)

    # Narrow writeback: only the first head_out lanes (actions + value + pad)
    # hit HBM -> 16x less write traffic than a (tile_b, 128) f32 slab.
    out_ref[...] = packed[:, :head_out].astype(out_ref.dtype)


def pack_params(params):
    """One-time weight preparation (call ONCE, outside the rollout loop):
       * fused 128-lane-dense actor+critic head weight/bias (wh / bh)
       * layer-1 K (state_size) zero-padded up to a multiple of 128
       * bf16 casts for all MXU weight operands; biases stay f32.
    Returns (packed_params_dict, action_size)."""
    state_size = params["w1"].shape[0]
    hidden, action_size = params["wa"].shape
    assert action_size + 1 <= HEAD_PAD, "fused head assumes action_size + 1 <= 128"

    k_pad = _round_up(max(state_size, 1), 128)
    w1 = jnp.zeros((k_pad, params["w1"].shape[1]), jnp.float32)
    w1 = w1.at[:state_size, :].set(params["w1"])

    wh = jnp.zeros((hidden, HEAD_PAD), jnp.float32)
    wh = wh.at[:, :action_size].set(params["wa"])
    wh = wh.at[:, action_size:action_size + 1].set(params["wc"])
    bh = jnp.zeros((1, HEAD_PAD), jnp.float32)
    bh = bh.at[:, :action_size].set(params["ba"])
    bh = bh.at[:, action_size:action_size + 1].set(params["bc"])

    packed = {
        "w1": w1.astype(jnp.bfloat16), "b1": params["b1"],
        "w2": params["w2"].astype(jnp.bfloat16), "b2": params["b2"],
        "w3": params["w3"].astype(jnp.bfloat16), "b3": params["b3"],
        "wh": wh.astype(jnp.bfloat16), "bh": bh,
    }
    return packed, action_size


def actor_critic_forward(x, packed, *, action_size, tile_b=512, core_parallel=False):
    """ActorCritic forward via one pallas_call.

    x: (B, state_size) float32; `packed` from pack_params().
    Returns (action_probs (B, action_size), state_value (B, 1)), float32.
    """
    B, state_size = x.shape
    k_pad = packed["w1"].shape[0]
    head_out = _round_up(action_size + 1, 8)

    # Large batch tiles amortize per-grid-step overhead; weights are VMEM
    # resident so only the small x / out blocks scale with tile_b.
    tile_b = min(tile_b, _round_up(B, 128))
    n_tiles = pl.cdiv(B, tile_b)
    if core_parallel and n_tiles % 2 != 0:
        n_tiles += 1  # keep both TensorCores busy
    b_pad = n_tiles * tile_b

    # Pad rows to b_pad, cols to k_pad (lane-aligned layer-1 K), cast to bf16.
    x_bf = jnp.pad(x, ((0, b_pad - B), (0, k_pad - state_size))).astype(jnp.bfloat16)

    def resident(arr):
        # Constant index_map -> block index never changes between grid steps,
        # so Pallas keeps the weight VMEM-resident (no re-DMA per tile).
        return pl.BlockSpec(arr.shape, lambda *_: (0, 0))

    kernel = functools.partial(
        actor_critic_kernel, action_size=action_size, head_out=head_out)

    if core_parallel:
        # v7x: split batch tiles across the two TensorCores.
        half = n_tiles // 2
        grid = (2, half)
        x_spec = pl.BlockSpec((tile_b, k_pad), lambda c, i: (c * half + i, 0))
        out_spec = pl.BlockSpec((tile_b, head_out), lambda c, i: (c * half + i, 0))
        semantics = (pltpu.CORE_PARALLEL, pltpu.ARBITRARY)
    else:
        grid = (n_tiles,)
        x_spec = pl.BlockSpec((tile_b, k_pad), lambda i: (i, 0))
        out_spec = pl.BlockSpec((tile_b, head_out), lambda i: (i, 0))
        semantics = (pltpu.PARALLEL,)

    # NOTE: if tile_b is raised past ~2048 on v5e, also set
    # pltpu.CompilerParams(vmem_limit_bytes=...) (default scoped VMEM is 16 MiB).
    out = pl.pallas_call(
        kernel,
        out_shape=jax.ShapeDtypeStruct((b_pad, head_out), jnp.float32),
        grid=grid,
        in_specs=[
            x_spec,
            resident(packed["w1"]), resident(packed["b1"]),
            resident(packed["w2"]), resident(packed["b2"]),
            resident(packed["w3"]), resident(packed["b3"]),
            resident(packed["wh"]), resident(packed["bh"]),
        ],
        out_specs=out_spec,
        compiler_params=pltpu.CompilerParams(dimension_semantics=semantics),
    )(x_bf, packed["w1"], packed["b1"], packed["w2"], packed["b2"],
      packed["w3"], packed["b3"], packed["wh"], packed["bh"])

    probs = out[:B, :action_size]
    value = out[:B, action_size:action_size + 1]
    return probs, value


def init_params(key, state_size, action_size):
    """Deterministic synthetic parameter init (matches the module's layer shapes)."""
    dims = [(state_size, 512), (512, 256), (256, 128)]
    names = ["1", "2", "3"]
    params = {}
    keys = jax.random.split(key, 5)
    for k, (din, dout), n in zip(keys[:3], dims, names):
        kw, kb = jax.random.split(k)
        scale = 1.0 / jnp.sqrt(jnp.float32(din))
        params[f"w{n}"] = jax.random.uniform(
            kw, (din, dout), jnp.float32, -scale, scale)
        params[f"b{n}"] = jax.random.uniform(
            kb, (1, dout), jnp.float32, -scale, scale)
    # actor head
    kw, kb = jax.random.split(keys[3])
    scale = 1.0 / jnp.sqrt(jnp.float32(128))
    params["wa"] = jax.random.uniform(kw, (128, action_size), jnp.float32, -scale, scale)
    params["ba"] = jax.random.uniform(kb, (1, action_size), jnp.float32, -scale, scale)
    # critic head
    kw, kb = jax.random.split(keys[4])
    params["wc"] = jax.random.uniform(kw, (128, 1), jnp.float32, -scale, scale)
    params["bc"] = jax.random.uniform(kb, (1, 1), jnp.float32, -scale, scale)
    return params


if __name__ == "__main__":
    key = jax.random.PRNGKey(0)
    k_params, k_x = jax.random.split(key)

    B = 256          # rollout batch: fills MXU rows; single 256-row tile
    state_size = 32
    action_size = 4

    params = init_params(k_params, state_size, action_size)
    x = jax.random.normal(k_x, (B, state_size), jnp.float32)

    # One-time weight packing (outside the RL inner loop), then jit the forward.
    packed, a = pack_params(params)
    fwd = jax.jit(functools.partial(actor_critic_forward, action_size=a))
    probs, value = fwd(x, packed)
    jax.block_until_ready((probs, value))

    # Pure-JAX f32 reference.  Kernel uses bf16 MXU operands with f32
    # accumulation, so tolerances are loosened.
    def ref_forward(x, p):
        h = jnp.maximum(x @ p["w1"] + p["b1"], 0.0)
        h = jnp.maximum(h @ p["w2"] + p["b2"], 0.0)
        h = jnp.maximum(h @ p["w3"] + p["b3"], 0.0)
        logits = h @ p["wa"] + p["ba"]
        return jax.nn.softmax(logits, axis=-1), h @ p["wc"] + p["bc"]

    ref_probs, ref_value = ref_forward(x, params)
    assert probs.shape == (B, action_size) and value.shape == (B, 1)
    assert jnp.allclose(probs, ref_probs, atol=5e-2)
    assert jnp.allclose(value, ref_value, atol=5e-2)
    assert jnp.allclose(jnp.sum(probs, axis=-1), 1.0, atol=1e-3)

    print("KERNEL_OK")
</pallas_src>

<mosaic_0001>
module attributes {stable_mosaic.version = 11 : i64} {
  func.func @actor_critic_kernel(%arg0: i32, %arg1: memref<256x128xbf16, #tpu.memory_space<vmem>>, %arg2: memref<128x512xbf16, #tpu.memory_space<vmem>>, %arg3: memref<1x512xf32, #tpu.memory_space<vmem>>, %arg4: memref<512x256xbf16, #tpu.memory_space<vmem>>, %arg5: memref<1x256xf32, #tpu.memory_space<vmem>>, %arg6: memref<256x128xbf16, #tpu.memory_space<vmem>>, %arg7: memref<1x128xf32, #tpu.memory_space<vmem>>, %arg8: memref<128x128xbf16, #tpu.memory_space<vmem>>, %arg9: memref<1x128xf32, #tpu.memory_space<vmem>>, %arg10: memref<256x8xf32, #tpu.memory_space<vmem>>) attributes {dimension_semantics = [#tpu.dimension_semantics<parallel>], iteration_bounds = array<i64: 1>, scalar_prefetch = 0 : i64, scratch_operands = 0 : i64, tpu.core_type = #tpu.core_type<tc>, window_params = [{transform_indices = @transform_0, window_bounds = array<i64: 256, 128>}, {pipeline_mode = #tpu.pipeline_mode<synchronous>, transform_indices = @transform_1, window_bounds = array<i64: 128, 512>}, {pipeline_mode = #tpu.pipeline_mode<synchronous>, transform_indices = @transform_2, window_bounds = array<i64: 1, 512>}, {pipeline_mode = #tpu.pipeline_mode<synchronous>, transform_indices = @transform_3, window_bounds = array<i64: 512, 256>}, {pipeline_mode = #tpu.pipeline_mode<synchronous>, transform_indices = @transform_4, window_bounds = array<i64: 1, 256>}, {pipeline_mode = #tpu.pipeline_mode<synchronous>, transform_indices = @transform_5, window_bounds = array<i64: 256, 128>}, {pipeline_mode = #tpu.pipeline_mode<synchronous>, transform_indices = @transform_6, window_bounds = array<i64: 1, 128>}, {pipeline_mode = #tpu.pipeline_mode<synchronous>, transform_indices = @transform_7, window_bounds = array<i64: 128, 128>}, {pipeline_mode = #tpu.pipeline_mode<synchronous>, transform_indices = @transform_8, window_bounds = array<i64: 1, 128>}, {transform_indices = @transform_9, window_bounds = array<i64: 256, 8>}]} {
    %c0 = arith.constant 0 : index
    %c0_0 = arith.constant 0 : index
    %0 = vector.load %arg1[%c0, %c0_0] : memref<256x128xbf16, #tpu.memory_space<vmem>>, vector<256x128xbf16>
    %c0_1 = arith.constant 0 : index
    %c0_2 = arith.constant 0 : index
    %1 = vector.load %arg2[%c0_1, %c0_2] : memref<128x512xbf16, #tpu.memory_space<vmem>>, vector<128x512xbf16>
    %cst = arith.constant dense<0.000000e+00> : vector<256x512xf32>
    %2 = tpu.matmul %0, %1, %cst {dimension_numbers = #tpu.dot_dimension_numbers<[1], [0], [0], [1], [0, 0, 1, 1], [], []>} : vector<256x128xbf16>, vector<128x512xbf16>, vector<256x512xf32> -> vector<256x512xf32>
    %c0_3 = arith.constant 0 : index
    %c0_4 = arith.constant 0 : index
    %3 = vector.load %arg3[%c0_3, %c0_4] : memref<1x512xf32, #tpu.memory_space<vmem>>, vector<1x512xf32>
    %4 = vector.broadcast %3 : vector<1x512xf32> to vector<256x512xf32>
    %5 = arith.addf %2, %4 : vector<256x512xf32>
    %cst_5 = arith.constant 0.000000e+00 : f32
    %6 = vector.broadcast %cst_5 : f32 to vector<256x512xf32>
    %7 = arith.maximumf %5, %6 : vector<256x512xf32>
    %8 = arith.truncf %7 : vector<256x512xf32> to vector<256x512xbf16>
    %c0_6 = arith.constant 0 : index
    %c0_7 = arith.constant 0 : index
    %9 = vector.load %arg4[%c0_6, %c0_7] : memref<512x256xbf16, #tpu.memory_space<vmem>>, vector<512x256xbf16>
    %cst_8 = arith.constant dense<0.000000e+00> : vector<256x256xf32>
    %10 = tpu.matmul %8, %9, %cst_8 {dimension_numbers = #tpu.dot_dimension_numbers<[1], [0], [0], [1], [0, 0, 1, 1], [], []>} : vector<256x512xbf16>, vector<512x256xbf16>, vector<256x256xf32> -> vector<256x256xf32>
    %c0_9 = arith.constant 0 : index
    %c0_10 = arith.constant 0 : index
    %11 = vector.load %arg5[%c0_9, %c0_10] : memref<1x256xf32, #tpu.memory_space<vmem>>, vector<1x256xf32>
    %12 = vector.broadcast %11 : vector<1x256xf32> to vector<256x256xf32>
    %13 = arith.addf %10, %12 : vector<256x256xf32>
    %cst_11 = arith.constant 0.000000e+00 : f32
    %14 = vector.broadcast %cst_11 : f32 to vector<256x256xf32>
    %15 = arith.maximumf %13, %14 : vector<256x256xf32>
    %16 = arith.truncf %15 : vector<256x256xf32> to vector<256x256xbf16>
    %c0_12 = arith.constant 0 : index
    %c0_13 = arith.constant 0 : index
    %17 = vector.load %arg6[%c0_12, %c0_13] : memref<256x128xbf16, #tpu.memory_space<vmem>>, vector<256x128xbf16>
    %cst_14 = arith.constant dense<0.000000e+00> : vector<256x128xf32>
    %18 = tpu.matmul %16, %17, %cst_14 {dimension_numbers = #tpu.dot_dimension_numbers<[1], [0], [0], [1], [0, 0, 1, 1], [], []>} : vector<256x256xbf16>, vector<256x128xbf16>, vector<256x128xf32> -> vector<256x128xf32>
    %c0_15 = arith.constant 0 : index
    %c0_16 = arith.constant 0 : index
    %19 = vector.load %arg7[%c0_15, %c0_16] : memref<1x128xf32, #tpu.memory_space<vmem>>, vector<1x128xf32>
    %20 = vector.broadcast %19 : vector<1x128xf32> to vector<256x128xf32>
    %21 = arith.addf %18, %20 : vector<256x128xf32>
    %cst_17 = arith.constant 0.000000e+00 : f32
    %22 = vector.broadcast %cst_17 : f32 to vector<256x128xf32>
    %23 = arith.maximumf %21, %22 : vector<256x128xf32>
    %24 = arith.truncf %23 : vector<256x128xf32> to vector<256x128xbf16>
    %c0_18 = arith.constant 0 : index
    %c0_19 = arith.constant 0 : index
    %25 = vector.load %arg8[%c0_18, %c0_19] : memref<128x128xbf16, #tpu.memory_space<vmem>>, vector<128x128xbf16>
    %cst_20 = arith.constant dense<0.000000e+00> : vector<256x128xf32>
    %26 = tpu.matmul %24, %25, %cst_20 {dimension_numbers = #tpu.dot_dimension_numbers<[1], [0], [0], [1], [0, 0, 1, 1], [], []>} : vector<256x128xbf16>, vector<128x128xbf16>, vector<256x128xf32> -> vector<256x128xf32>
    %c0_21 = arith.constant 0 : index
    %c0_22 = arith.constant 0 : index
    %27 = vector.load %arg9[%c0_21, %c0_22] : memref<1x128xf32, #tpu.memory_space<vmem>>, vector<1x128xf32>
    %28 = vector.broadcast %27 : vector<1x128xf32> to vector<256x128xf32>
    %29 = arith.addf %26, %28 : vector<256x128xf32>
    %30 = tpu.iota {dimensions = array<i32: 1>} : vector<256x128xi32>
    %c4_i32 = arith.constant 4 : i32
    %31 = vector.broadcast %c4_i32 : i32 to vector<256x128xi32>
    %32 = arith.cmpi slt, %30, %31 : vector<256x128xi32>
    %c4_i32_23 = arith.constant 4 : i32
    %33 = vector.broadcast %c4_i32_23 : i32 to vector<256x128xi32>
    %34 = arith.cmpi eq, %30, %33 : vector<256x128xi32>
    %cst_24 = arith.constant 0xFF800000 : f32
    %35 = vector.broadcast %cst_24 : f32 to vector<256x128xf32>
    %36 = arith.select %32, %29, %35 : vector<256x128xi1>, vector<256x128xf32>
    %cst_25 = arith.constant dense<0xFF800000> : vector<256xf32>
    %37 = vector.multi_reduction <maximumf>, %36, %cst_25 [1] : vector<256x128xf32> to vector<256xf32>
    %38 = vector.shape_cast %37 : vector<256xf32> to vector<256x1xf32>
    %39 = vector.broadcast %38 : vector<256x1xf32> to vector<256x128xf32>
    %40 = arith.subf %36, %39 : vector<256x128xf32>
    %41 = math.exp %40 : vector<256x128xf32>
    %cst_26 = arith.constant dense<0.000000e+00> : vector<256xf32>
    %42 = vector.multi_reduction <add>, %41, %cst_26 [1] : vector<256x128xf32> to vector<256xf32>
    %43 = vector.shape_cast %42 : vector<256xf32> to vector<256x1xf32>
    %cst_27 = arith.constant 1.000000e+00 : f32
    %44 = vector.broadcast %cst_27 : f32 to vector<256x1xf32>
    %45 = arith.divf %44, %43 : vector<256x1xf32>
    %46 = vector.broadcast %45 : vector<256x1xf32> to vector<256x128xf32>
    %47 = arith.mulf %41, %46 : vector<256x128xf32>
    %48 = arith.select %34, %29, %47 : vector<256x128xi1>, vector<256x128xf32>
    %49 = vector.extract_strided_slice %48 {offsets = [0, 0], sizes = [256, 8], strides = [1, 1]} : vector<256x128xf32> to vector<256x8xf32>
    %c0_28 = arith.constant 0 : index
    %c0_29 = arith.constant 0 : index
    %50 = vector.load %arg10[%c0_28, %c0_29] : memref<256x8xf32, #tpu.memory_space<vmem>>, vector<256x8xf32>
    tpu.vector_store %arg10[%c0_28, %c0_29], %49 {strides = array<i32>} : memref<256x8xf32, #tpu.memory_space<vmem>>, vector<256x8xf32>,
    return
  }
  func.func @transform_0(%arg0: i32) -> (i32, i32) {
    %c0_i32 = arith.constant 0 : i32
    %c0_i32_0 = arith.constant 0 : i32
    return %arg0, %c0_i32 : i32, i32
  }
  func.func @transform_1(%arg0: i32) -> (i32, i32) {
    %c0_i32 = arith.constant 0 : i32
    %c0_i32_0 = arith.constant 0 : i32
    %c0_i32_1 = arith.constant 0 : i32
    return %c0_i32, %c0_i32_0 : i32, i32
  }
  func.func @transform_2(%arg0: i32) -> (i32, i32) {
    %c0_i32 = arith.constant 0 : i32
    %c0_i32_0 = arith.constant 0 : i32
    %c0_i32_1 = arith.constant 0 : i32
    return %c0_i32, %c0_i32_0 : i32, i32
  }
  func.func @transform_3(%arg0: i32) -> (i32, i32) {
    %c0_i32 = arith.constant 0 : i32
    %c0_i32_0 = arith.constant 0 : i32
    %c0_i32_1 = arith.constant 0 : i32
    return %c0_i32, %c0_i32_0 : i32, i32
  }
  func.func @transform_4(%arg0: i32) -> (i32, i32) {
    %c0_i32 = arith.constant 0 : i32
    %c0_i32_0 = arith.constant 0 : i32
    %c0_i32_1 = arith.constant 0 : i32
    return %c0_i32, %c0_i32_0 : i32, i32
  }
  func.func @transform_5(%arg0: i32) -> (i32, i32) {
    %c0_i32 = arith.constant 0 : i32
    %c0_i32_0 = arith.constant 0 : i32
    %c0_i32_1 = arith.constant 0 : i32
    return %c0_i32, %c0_i32_0 : i32, i32
  }
  func.func @transform_6(%arg0: i32) -> (i32, i32) {
    %c0_i32 = arith.constant 0 : i32
    %c0_i32_0 = arith.constant 0 : i32
    %c0_i32_1 = arith.constant 0 : i32
    return %c0_i32, %c0_i32_0 : i32, i32
  }
  func.func @transform_7(%arg0: i32) -> (i32, i32) {
    %c0_i32 = arith.constant 0 : i32
    %c0_i32_0 = arith.constant 0 : i32
    %c0_i32_1 = arith.constant 0 : i32
    return %c0_i32, %c0_i32_0 : i32, i32
  }
  func.func @transform_8(%arg0: i32) -> (i32, i32) {
    %c0_i32 = arith.constant 0 : i32
    %c0_i32_0 = arith.constant 0 : i32
    %c0_i32_1 = arith.constant 0 : i32
    return %c0_i32, %c0_i32_0 : i32, i32
  }
  func.func @transform_9(%arg0: i32) -> (i32, i32) {
    %c0_i32 = arith.constant 0 : i32
    %c0_i32_0 = arith.constant 0 : i32
    return %arg0, %c0_i32 : i32, i32
  }
}

</mosaic_0001>

<llo_original>
// kernel: actor_critic_forward.1
$region0: #{actor_critic_forward.1}
  #allocation0 [shape = 'u32[]', space=smem, size = 0x4, offset = 0x4, fixed_abs, tag = 'smem constant byte address 0x4 - core index']
  #allocation1 [shape = 'u32[144,128]{1,0:T(1,128)}', space=vmem, size = 0x12000, scoped, tag = 'internal scratch']
  %s0 = inlined_call_operand.vmem [shape: bf16[256,128], index: 0, kind: input, shape index: {}]
  %s1 = inlined_call_operand.hbm [shape: bf16[128,512], index: 1, kind: input, shape index: {}]
  %s2 = inlined_call_operand.vmem [shape: f32[1,512], index: 2, kind: input, shape index: {}]
  %s3 = inlined_call_operand.vmem [shape: bf16[512,256], index: 3, kind: input, shape index: {}]
  %s4 = inlined_call_operand.vmem [shape: f32[1,256], index: 4, kind: input, shape index: {}]
  %s5 = inlined_call_operand.hbm [shape: bf16[256,128], index: 5, kind: input, shape index: {}]
  %s6 = inlined_call_operand.vmem [shape: f32[1,128], index: 6, kind: input, shape index: {}]
  %s7 = inlined_call_operand.hbm [shape: bf16[128,128], index: 7, kind: input, shape index: {}]
  %s8 = inlined_call_operand.vmem [shape: f32[1,128], index: 8, kind: input, shape index: {}]
  %s9 = inlined_call_operand.vmem [shape: f32[256,8], index: 9, kind: output, shape index: {}]
  %s10 = sld [smem:[#allocation0]]
  $region58: #{actor_critic_forward.1} parent=0
    _
  %s12 = ssub.s32 1, %s10
  %s13 = scalar_select 0, %s12, %s10
  $region1: #{actor_critic_forward.1} parent=0
    #allocation2 [shape = 'u8[131072]{0}', space=vmem, size = 0x20000, scoped, tag = 'input window, operand 1, single buffered']
    #allocation3 [shape = 's32[1]{0}', space=sflag, size = 0x4, scoped, tag = 'scoped memory for actor_critic_forward.1']
    #allocation4 [shape = 'u8[65536]{0}', space=vmem, size = 0x10000, scoped, tag = 'input window, operand 5, single buffered']
    #allocation5 [shape = 's32[1]{0}', space=sflag, size = 0x4, scoped, tag = 'scoped memory for actor_critic_forward.1']
    #allocation6 [shape = 'u8[32768]{0}', space=vmem, size = 0x8000, scoped, tag = 'input window, operand 7, single buffered']
    %14 = vsyncpa [#allocation3], 0
    %15 = vsyncpa [#allocation5], 0
    // Predicated region
    $region2: #{actor_critic_forward.1} parent=1 // pred_check
      _
    $region3: #{actor_critic_forward.1} parent=1 // pred_check_branch
      %17 = sbr.rel (0) target = $region5
    $region4: #{actor_critic_forward.1} parent=1 // pred_region
      _
    $region5: #{actor_critic_forward.1} parent=1 // pred_fallthru
      _
    // Predicated region
    $region6: #{actor_critic_forward.1} parent=1 // pred_check
      _
    $region7: #{actor_critic_forward.1} parent=1 // pred_check_branch
      %19 = sbr.rel (0) target = $region9
    $region8: #{actor_critic_forward.1} parent=1 // pred_region
      %s21 = ssub.s32 4096, 4096
      %22 = vsyncadd [#allocation3], %s21
      %s23 = sshll.u32 [#allocation2], 4
      %s24 = int_to_ptr.vmem [resolvable:$true] %s23
      %29 = dma.hbm_to_vmem [thread:$0]  %s1, 4096, %s24, [#allocation3], 256, 256, 16
    $region9: #{actor_critic_forward.1} parent=1 // pred_fallthru
      _
    // Predicated region
    $region10: #{actor_critic_forward.1} parent=1 // pred_check
      _
    $region11: #{actor_critic_forward.1} parent=1 // pred_check_branch
      %31 = sbr.rel (0) target = $region13
    $region12: #{actor_critic_forward.1} parent=1 // pred_region
      _
    $region13: #{actor_critic_forward.1} parent=1 // pred_fallthru
      _
    // Predicated region
    $region14: #{actor_critic_forward.1} parent=1 // pred_check
      _
    $region15: #{actor_critic_forward.1} parent=1 // pred_check_branch
      %33 = sbr.rel (0) target = $region17
    $region16: #{actor_critic_forward.1} parent=1 // pred_region
      _
    $region17: #{actor_critic_forward.1} parent=1 // pred_fallthru
      _
    // Predicated region
    $region18: #{actor_critic_forward.1} parent=1 // pred_check
      _
    $region19: #{actor_critic_forward.1} parent=1 // pred_check_branch
      %35 = sbr.rel (0) target = $region21
    $region20: #{actor_critic_forward.1} parent=1 // pred_region
      _
    $region21: #{actor_critic_forward.1} parent=1 // pred_fallthru
      _
    // Predicated region
    $region22: #{actor_critic_forward.1} parent=1 // pred_check
      _
    $region23: #{actor_critic_forward.1} parent=1 // pred_check_branch
      %37 = sbr.rel (0) target = $region25
    $region24: #{actor_critic_forward.1} parent=1 // pred_region
      %s39 = ssub.s32 2048, 2048
      %40 = vsyncadd [#allocation5], %s39
      %s41 = sshll.u32 [#allocation4], 4
      %s42 = int_to_ptr.vmem [resolvable:$true] %s41
      %47 = dma.hbm_to_vmem [thread:$0]  %s5, 2048, %s42, [#allocation5], 64, 64, 4
    $region25: #{actor_critic_forward.1} parent=1 // pred_fallthru
      _
    // Predicated region
    $region26: #{actor_critic_forward.1} parent=1 // pred_check
      _
    $region27: #{actor_critic_forward.1} parent=1 // pred_check_branch
      %49 = sbr.rel (0) target = $region29
    $region28: #{actor_critic_forward.1} parent=1 // pred_region
      _
    $region29: #{actor_critic_forward.1} parent=1 // pred_fallthru
      _
    // Predicated region
    $region30: #{actor_critic_forward.1} parent=1 // pred_check
      _
    $region31: #{actor_critic_forward.1} parent=1 // pred_check_branch
      %51 = sbr.rel (0) target = $region33
    $region32: #{actor_critic_forward.1} parent=1 // pred_region
      %s53 = ssub.s32 1024, 1024
      %54 = vsyncadd [#allocation5], %s53
      %s55 = sshll.u32 [#allocation6], 4
      %s56 = int_to_ptr.vmem [resolvable:$true] %s55
      %61 = dma.hbm_to_vmem [thread:$0]  %s7, 1024, %s56, [#allocation5], 64, 64, 4
    $region33: #{actor_critic_forward.1} parent=1 // pred_fallthru
      _
    // Predicated region
    $region34: #{actor_critic_forward.1} parent=1 // pred_check
      _
    $region35: #{actor_critic_forward.1} parent=1 // pred_check_branch
      %63 = sbr.rel (0) target = $region37
    $region36: #{actor_critic_forward.1} parent=1 // pred_region
      _
    $region37: #{actor_critic_forward.1} parent=1 // pred_fallthru
      _
    // Predicated region
    $region38: #{actor_critic_forward.1} parent=1 // pred_check
      _
    $region39: #{actor_critic_forward.1} parent=1 // pred_check_branch
      %65 = sbr.rel (0) target = $region41
    $region40: #{actor_critic_forward.1} parent=1 // pred_region
      %66 = dma.done [#allocation3], 4096
    $region41: #{actor_critic_forward.1} parent=1 // pred_fallthru
      _
    // Predicated region
    $region42: #{actor_critic_forward.1} parent=1 // pred_check
      _
    $region43: #{actor_critic_forward.1} parent=1 // pred_check_branch
      %68 = sbr.rel (0) target = $region45
    $region44: #{actor_critic_forward.1} parent=1 // pred_region
      %69 = dma.done [#allocation5], 2048
    $region45: #{actor_critic_forward.1} parent=1 // pred_fallthru
      _
    // Predicated region
    $region46: #{actor_critic_forward.1} parent=1 // pred_check
      _
    $region47: #{actor_critic_forward.1} parent=1 // pred_check_branch
      %71 = sbr.rel (0) target = $region49
    $region48: #{actor_critic_forward.1} parent=1 // pred_region
      %72 = dma.done [#allocation5], 1024
    $region49: #{actor_critic_forward.1} parent=1 // pred_fallthru
      _
    %v74 = vld [vmem:[%s0] sm:$0xf]
    %v75 = vld [vmem:[%s0 + $0x4] sm:$0xf]
    %v76 = vld [vmem:[%s0 + $0x8] sm:$0xf]
    %v77 = vld [vmem:[%s0 + $0xc] sm:$0xf]
    %v78 = vld [vmem:[%s0 + $0x10] sm:$0xf]
    %v79 = vld [vmem:[%s0 + $0x14] sm:$0xf]
    %v80 = vld [vmem:[%s0 + $0x18] sm:$0xf]
    %v81 = vld [vmem:[%s0 + $0x1c] sm:$0xf]
    %v82 = vld [vmem:[%s0 + $0x20] sm:$0xf]
    %v83 = vld [vmem:[%s0 + $0x24] sm:$0xf]
    %v84 = vld [vmem:[%s0 + $0x28] sm:$0xf]
    %v85 = vld [vmem:[%s0 + $0x2c] sm:$0xf]
    %v86 = vld [vmem:[%s0 + $0x30] sm:$0xf]
    %v87 = vld [vmem:[%s0 + $0x34] sm:$0xf]
    %v88 = vld [vmem:[%s0 + $0x38] sm:$0xf]
    %v89 = vld [vmem:[%s0 + $0x3c] sm:$0xf]
    %v90 = vld [vmem:[%s0 + $0x40] sm:$0xf]
    %v91 = vld [vmem:[%s0 + $0x44] sm:$0xf]
    %v92 = vld [vmem:[%s0 + $0x48] sm:$0xf]
    %v93 = vld [vmem:[%s0 + $0x4c] sm:$0xf]
    %v94 = vld [vmem:[%s0 + $0x50] sm:$0xf]
    %v95 = vld [vmem:[%s0 + $0x54] sm:$0xf]
    %v96 = vld [vmem:[%s0 + $0x58] sm:$0xf]
    %v97 = vld [vmem:[%s0 + $0x5c] sm:$0xf]
    %v98 = vld [vmem:[%s0 + $0x60] sm:$0xf]
    %v99 = vld [vmem:[%s0 + $0x64] sm:$0xf]
    %v100 = vld [vmem:[%s0 + $0x68] sm:$0xf]
    %v101 = vld [vmem:[%s0 + $0x6c] sm:$0xf]
    %v102 = vld [vmem:[%s0 + $0x70] sm:$0xf]
    %v103 = vld [vmem:[%s0 + $0x74] sm:$0xf]
    %v104 = vld [vmem:[%s0 + $0x78] sm:$0xf]
    %v105 = vld [vmem:[%s0 + $0x7c] sm:$0xf]
    %v106 = vld [vmem:[#allocation2] sm:$0xff]
    %v107 = vld [vmem:[#allocation2 + $0x8] sm:$0xff]
    %v108 = vld [vmem:[#allocation2 + $0x10] sm:$0xff]
    %v109 = vld [vmem:[#allocation2 + $0x18] sm:$0xff]
    %v110 = vld [vmem:[#allocation2 + $0x20] sm:$0xff]
    %v111 = vld [vmem:[#allocation2 + $0x28] sm:$0xff]
    %v112 = vld [vmem:[#allocation2 + $0x30] sm:$0xff]
    %v113 = vld [vmem:[#allocation2 + $0x38] sm:$0xff]
    %v114 = vld [vmem:[#allocation2 + $0x40] sm:$0xff]
    %v115 = vld [vmem:[#allocation2 + $0x48] sm:$0xff]
    %v116 = vld [vmem:[#allocation2 + $0x50] sm:$0xff]
    %v117 = vld [vmem:[#allocation2 + $0x58] sm:$0xff]
    %v118 = vld [vmem:[#allocation2 + $0x60] sm:$0xff]
    %v119 = vld [vmem:[#allocation2 + $0x68] sm:$0xff]
    %v120 = vld [vmem:[#allocation2 + $0x70] sm:$0xff]
    %v121 = vld [vmem:[#allocation2 + $0x78] sm:$0xff]
    %v122 = vld [vmem:[#allocation2 + $0x80] sm:$0xff]
    %v123 = vld [vmem:[#allocation2 + $0x88] sm:$0xff]
    %v124 = vld [vmem:[#allocation2 + $0x90] sm:$0xff]
    %v125 = vld [vmem:[#allocation2 + $0x98] sm:$0xff]
    %v126 = vld [vmem:[#allocation2 + $0xa0] sm:$0xff]
    %v127 = vld [vmem:[#allocation2 + $0xa8] sm:$0xff]
    %v128 = vld [vmem:[#allocation2 + $0xb0] sm:$0xff]
    %v129 = vld [vmem:[#allocation2 + $0xb8] sm:$0xff]
    %v130 = vld [vmem:[#allocation2 + $0xc0] sm:$0xff]
    %v131 = vld [vmem:[#allocation2 + $0xc8] sm:$0xff]
    %v132 = vld [vmem:[#allocation2 + $0xd0] sm:$0xff]
    %v133 = vld [vmem:[#allocation2 + $0xd8] sm:$0xff]
    %v134 = vld [vmem:[#allocation2 + $0xe0] sm:$0xff]
    %v135 = vld [vmem:[#allocation2 + $0xe8] sm:$0xff]
    %v136 = vld [vmem:[#allocation2 + $0xf0] sm:$0xff]
    %v137 = vld [vmem:[#allocation2 + $0xf8] sm:$0xff]
    %v138 = vld [vmem:[%s2] sm:$0xf]
    %v140 = vlaneseq
    %v141 = vshrl.u32 %v140, 7
    %v142 = vsub.s32 0, %v141
    %v143 = vrot.slane %v138, %v142
    %v144 = vlaneseq
    %v145 = vshrl.u32 %v144, 7
    %v146 = vsub.s32 1, %v145
    %v147 = vrot.slane %v138, %v146
    %v148 = vlaneseq
    %v149 = vshrl.u32 %v148, 7
    %v150 = vsub.s32 2, %v149
    %v151 = vrot.slane %v138, %v150
    %v152 = vlaneseq
    %v153 = vshrl.u32 %v152, 7
    %v154 = vsub.s32 3, %v153
    %v155 = vrot.slane %v138, %v154
    %v192 = vunpack.c.l.b16 %v74
    %v193 = vunpack.c.l.b16 %v75
    %v194 = vunpack.c.l.b16 %v76
    %v195 = vunpack.c.l.b16 %v77
    %v196 = vunpack.c.l.b16 %v78
    %v197 = vunpack.c.l.b16 %v79
    %v198 = vunpack.c.l.b16 %v80
    %v199 = vunpack.c.l.b16 %v81
    %v200 = vunpack.c.l.b16 %v82
    %v201 = vunpack.c.l.b16 %v83
    %v202 = vunpack.c.l.b16 %v84
    %v203 = vunpack.c.l.b16 %v85
    %v204 = vunpack.c.l.b16 %v86
    %v205 = vunpack.c.l.b16 %v87
    %v206 = vunpack.c.l.b16 %v88
    %v207 = vunpack.c.l.b16 %v89
    %v208 = vunpack.c.l.b16 %v90
    %v209 = vunpack.c.l.b16 %v91
    %v210 = vunpack.c.l.b16 %v92
    %v211 = vunpack.c.l.b16 %v93
    %v212 = vunpack.c.l.b16 %v94
    %v213 = vunpack.c.l.b16 %v95
    %v214 = vunpack.c.l.b16 %v96
    %v215 = vunpack.c.l.b16 %v97
    %v216 = vunpack.c.l.b16 %v98
    %v217 = vunpack.c.l.b16 %v99
    %v218 = vunpack.c.l.b16 %v100
    %v219 = vunpack.c.l.b16 %v101
    %v220 = vunpack.c.l.b16 %v102
    %v221 = vunpack.c.l.b16 %v103
    %v222 = vunpack.c.l.b16 %v104
    %v223 = vunpack.c.l.b16 %v105
    %v224 = vpack.c.b16 %v193, %v192
    %v225 = vpack.c.b16 %v195, %v194
    %v226 = vpack.c.b16 %v197, %v196
    %v227 = vpack.c.b16 %v199, %v198
    %v228 = vpack.c.b16 %v201, %v200
    %v229 = vpack.c.b16 %v203, %v202
    %v230 = vpack.c.b16 %v205, %v204
    %v231 = vpack.c.b16 %v207, %v206
    %v232 = vpack.c.b16 %v209, %v208
    %v233 = vpack.c.b16 %v211, %v210
    %v234 = vpack.c.b16 %v213, %v212
    %v235 = vpack.c.b16 %v215, %v214
    %v236 = vpack.c.b16 %v217, %v216
    %v237 = vpack.c.b16 %v219, %v218
    %v238 = vpack.c.b16 %v221, %v220
    %v239 = vpack.c.b16 %v223, %v222
    %v288 = vunpack.c.l.b16 %v106
    %v289 = vunpack.c.h.b16 %v106
    %v290 = vunpack.c.l.b16 %v107
    %v291 = vunpack.c.h.b16 %v107
    %v292 = vunpack.c.l.b16 %v108
    %v293 = vunpack.c.h.b16 %v108
    %v294 = vunpack.c.l.b16 %v109
    %v295 = vunpack.c.h.b16 %v109
    %v296 = vunpack.c.l.b16 %v110
    %v297 = vunpack.c.h.b16 %v110
    %v298 = vunpack.c.l.b16 %v111
    %v299 = vunpack.c.h.b16 %v111
    %v300 = vunpack.c.l.b16 %v112
    %v301 = vunpack.c.h.b16 %v112
    %v302 = vunpack.c.l.b16 %v113
    %v303 = vunpack.c.h.b16 %v113
    %v304 = vunpack.c.l.b16 %v114
    %v305 = vunpack.c.h.b16 %v114
    %v306 = vunpack.c.l.b16 %v115
    %v307 = vunpack.c.h.b16 %v115
    %v308 = vunpack.c.l.b16 %v116
    %v309 = vunpack.c.h.b16 %v116
    %v310 = vunpack.c.l.b16 %v117
    %v311 = vunpack.c.h.b16 %v117
    %v312 = vunpack.c.l.b16 %v118
    %v313 = vunpack.c.h.b16 %v118
    %v314 = vunpack.c.l.b16 %v119
    %v315 = vunpack.c.h.b16 %v119
    %v316 = vunpack.c.l.b16 %v120
    %v317 = vunpack.c.h.b16 %v120
    %v318 = vunpack.c.l.b16 %v121
    %v319 = vunpack.c.h.b16 %v121
    %v320 = vunpack.c.l.b16 %v122
    %v321 = vunpack.c.h.b16 %v122
    %v322 = vunpack.c.l.b16 %v123
    %v323 = vunpack.c.h.b16 %v123
    %v324 = vunpack.c.l.b16 %v124
    %v325 = vunpack.c.h.b16 %v124
    %v326 = vunpack.c.l.b16 %v125
    %v327 = vunpack.c.h.b16 %v125
    %v328 = vunpack.c.l.b16 %v126
    %v329 = vunpack.c.h.b16 %v126
    %v330 = vunpack.c.l.b16 %v127
    %v331 = vunpack.c.h.b16 %v127
    %v332 = vunpack.c.l.b16 %v128
    %v333 = vunpack.c.h.b16 %v128
    %v334 = vunpack.c.l.b16 %v129
    %v335 = vunpack.c.h.b16 %v129
    %v336 = vunpack.c.l.b16 %v130
    %v337 = vunpack.c.h.b16 %v130
    %v338 = vunpack.c.l.b16 %v131
    %v339 = vunpack.c.h.b16 %v131
    %v340 = vunpack.c.l.b16 %v132
    %v341 = vunpack.c.h.b16 %v132
    %v342 = vunpack.c.l.b16 %v133
    %v343 = vunpack.c.h.b16 %v133
    %v344 = vunpack.c.l.b16 %v134
    %v345 = vunpack.c.h.b16 %v134
    %v346 = vunpack.c.l.b16 %v135
    %v347 = vunpack.c.h.b16 %v135
    %v348 = vunpack.c.l.b16 %v136
    %v349 = vunpack.c.h.b16 %v136
    %v350 = vunpack.c.l.b16 %v137
    %v351 = vunpack.c.h.b16 %v137
    %v352 = vpack.c.b16 %v292, %v288
    %v353 = vpack.c.b16 %v293, %v289
    %v354 = vpack.c.b16 %v294, %v290
    %v355 = vpack.c.b16 %v295, %v291
    %v356 = vpack.c.b16 %v300, %v296
    %v357 = vpack.c.b16 %v301, %v297
    %v358 = vpack.c.b16 %v302, %v298
    %v359 = vpack.c.b16 %v303, %v299
    %v360 = vpack.c.b16 %v308, %v304
    %v361 = vpack.c.b16 %v309, %v305
    %v362 = vpack.c.b16 %v310, %v306
    %v363 = vpack.c.b16 %v311, %v307
    %v364 = vpack.c.b16 %v316, %v312
    %v365 = vpack.c.b16 %v317, %v313
    %v366 = vpack.c.b16 %v318, %v314
    %v367 = vpack.c.b16 %v319, %v315
    %v368 = vpack.c.b16 %v324, %v320
    %v369 = vpack.c.b16 %v325, %v321
    %v370 = vpack.c.b16 %v326, %v322
    %v371 = vpack.c.b16 %v327, %v323
    %v372 = vpack.c.b16 %v332, %v328
    %v373 = vpack.c.b16 %v333, %v329
    %v374 = vpack.c.b16 %v334, %v330
    %v375 = vpack.c.b16 %v335, %v331
    %v376 = vpack.c.b16 %v340, %v336
    %v377 = vpack.c.b16 %v341, %v337
    %v378 = vpack.c.b16 %v342, %v338
    %v379 = vpack.c.b16 %v343, %v339
    %v380 = vpack.c.b16 %v348, %v344
    %v381 = vpack.c.b16 %v349, %v345
    %v382 = vpack.c.b16 %v350, %v346
    %v383 = vpack.c.b16 %v351, %v347
    %416 = vmatprep.subr.bf16.mxu0 %v353
    %417 = vmatpush1.bf16.msra.mxu0 %v352
    %418 = vmatprep.subr.bf16.mxu0 %v357
    %419 = vmatpush1.bf16.msra.mxu0 %v356
    %420 = vmatprep.subr.bf16.mxu0 %v361
    %421 = vmatpush1.bf16.msra.mxu0 %v360
    %422 = vmatprep.subr.bf16.mxu0 %v365
    %423 = vmatpush1.bf16.msra.mxu0 %v364
    %424 = vmatprep.subr.bf16.mxu0 %v369
    %425 = vmatpush1.bf16.msra.mxu0 %v368
    %426 = vmatprep.subr.bf16.mxu0 %v373
    %427 = vmatpush1.bf16.msra.mxu0 %v372
    %428 = vmatprep.subr.bf16.mxu0 %v377
    %429 = vmatpush1.bf16.msra.mxu0 %v376
    %430 = vmatprep.subr.bf16.mxu0 %v381
    %431 = vmatpush1.bf16.msra.mxu0 %v380
    %432 = vmatprep.subr.bf16.mxu0 0
    %433 = vmatpush1.bf16.msra.mxu0 0
    %434 = vmatprep.subr.bf16.mxu0 0
    %435 = vmatpush1.bf16.msra.mxu0 0
    %436 = vmatprep.subr.bf16.mxu0 0
    %437 = vmatpush1.bf16.msra.mxu0 0
    %438 = vmatprep.subr.bf16.mxu0 0
    %439 = vmatpush1.bf16.msra.mxu0 0
    %440 = vmatprep.subr.bf16.mxu0 0
    %441 = vmatpush1.bf16.msra.mxu0 0
    %442 = vmatprep.subr.bf16.mxu0 0
    %443 = vmatpush1.bf16.msra.mxu0 0
    %444 = vmatprep.subr.bf16.mxu0 0
    %445 = vmatpush1.bf16.msra.mxu0 0
    %446 = vmatprep.subr.bf16.mxu0 0
    %447 = vmatpush1.bf16.msra.mxu0 0
    %448 = vmatprep.mubr.bf16.mxu0 0
    %449 = vmatmul.mubr.bf16.gmra.mrb[0].mxu0 %v224
    %v450 = vpop.f32.mrb[0].mxu0
    %v451 = vadd.f32 %v143, %v450
    %v452 = vpop.f32.mrb[0].mxu0
    %v453 = vadd.f32 %v147, %v452
    %v454 = vpop.f32.mrb[0].mxu0
    %v455 = vadd.f32 %v143, %v454
    %v456 = vpop.f32.mrb[0].mxu0
    %v457 = vadd.f32 %v147, %v456
    %458 = vmatprep.mubr.bf16.mxu0 0
    %459 = vmatmul.mubr.bf16.gmra.mrb[0].mxu0 %v225
    %v460 = vpop.f32.mrb[0].mxu0
    %v461 = vadd.f32 %v143, %v460
    %v462 = vpop.f32.mrb[0].mxu0
    %v463 = vadd.f32 %v147, %v462
    %v464 = vpop.f32.mrb[0].mxu0
    %v465 = vadd.f32 %v143, %v464
    %v466 = vpop.f32.mrb[0].mxu0
    %v467 = vadd.f32 %v147, %v466
    %468 = vmatprep.mubr.bf16.mxu0 0
    %469 = vmatmul.mubr.bf16.gmra.mrb[0].mxu0 %v226
    %v470 = vpop.f32.mrb[0].mxu0
    %v471 = vadd.f32 %v143, %v470
    %v472 = vpop.f32.mrb[0].mxu0
    %v473 = vadd.f32 %v147, %v472
    %v474 = vpop.f32.mrb[0].mxu0
    %v475 = vadd.f32 %v143, %v474
    %v476 = vpop.f32.mrb[0].mxu0
    %v477 = vadd.f32 %v147, %v476
    %478 = vmatprep.mubr.bf16.mxu0 0
    %479 = vmatmul.mubr.bf16.gmra.mrb[0].mxu0 %v227
    %v480 = vpop.f32.mrb[0].mxu0
    %v481 = vadd.f32 %v143, %v480
    %v482 = vpop.f32.mrb[0].mxu0
    %v483 = vadd.f32 %v147, %v482
    %v484 = vpop.f32.mrb[0].mxu0
    %v485 = vadd.f32 %v143, %v484
    %v486 = vpop.f32.mrb[0].mxu0
    %v487 = vadd.f32 %v147, %v486
    %488 = vmatprep.mubr.bf16.mxu0 0
    %489 = vmatmul.mubr.bf16.gmra.mrb[0].mxu0 %v228
    %v490 = vpop.f32.mrb[0].mxu0
    %v491 = vadd.f32 %v143, %v490
    %v492 = vpop.f32.mrb[0].mxu0
    %v493 = vadd.f32 %v147, %v492
    %v494 = vpop.f32.mrb[0].mxu0
    %v495 = vadd.f32 %v143, %v494
    %v496 = vpop.f32.mrb[0].mxu0
    %v497 = vadd.f32 %v147, %v496
    %498 = vmatprep.mubr.bf16.mxu0 0
    %499 = vmatmul.mubr.bf16.gmra.mrb[0].mxu0 %v229
    %v500 = vpop.f32.mrb[0].mxu0
    %v501 = vadd.f32 %v143, %v500
    %v502 = vpop.f32.mrb[0].mxu0
    %v503 = vadd.f32 %v147, %v502
    %v504 = vpop.f32.mrb[0].mxu0
    %v505 = vadd.f32 %v143, %v504
    %v506 = vpop.f32.mrb[0].mxu0
    %v507 = vadd.f32 %v147, %v506
    %508 = vmatprep.mubr.bf16.mxu0 0
    %509 = vmatmul.mubr.bf16.gmra.mrb[0].mxu0 %v230
    %v510 = vpop.f32.mrb[0].mxu0
    %v511 = vadd.f32 %v143, %v510
    %v512 = vpop.f32.mrb[0].mxu0
    %v513 = vadd.f32 %v147, %v512
    %v514 = vpop.f32.mrb[0].mxu0
    %v515 = vadd.f32 %v143, %v514
    %v516 = vpop.f32.mrb[0].mxu0
    %v517 = vadd.f32 %v147, %v516
    %518 = vmatprep.mubr.bf16.mxu0 0
    %519 = vmatmul.mubr.bf16.gmra.mrb[0].mxu0 %v231
    %v520 = vpop.f32.mrb[0].mxu0
    %v521 = vadd.f32 %v143, %v520
    %v522 = vpop.f32.mrb[0].mxu0
    %v523 = vadd.f32 %v147, %v522
    %v524 = vpop.f32.mrb[0].mxu0
    %v525 = vadd.f32 %v143, %v524
    %v526 = vpop.f32.mrb[0].mxu0
    %v527 = vadd.f32 %v147, %v526
    %528 = vmatprep.mubr.bf16.mxu0 0
    %529 = vmatmul.mubr.bf16.gmra.mrb[0].mxu0 %v232
    %v530 = vpop.f32.mrb[0].mxu0
    %v531 = vadd.f32 %v143, %v530
    %v532 = vpop.f32.mrb[0].mxu0
    %v533 = vadd.f32 %v147, %v532
    %v534 = vpop.f32.mrb[0].mxu0
    %v535 = vadd.f32 %v143, %v534
    %v536 = vpop.f32.mrb[0].mxu0
    %v537 = vadd.f32 %v147, %v536
    %538 = vmatprep.mubr.bf16.mxu0 0
    %539 = vmatmul.mubr.bf16.gmra.mrb[0].mxu0 %v233
    %v540 = vpop.f32.mrb[0].mxu0
    %v541 = vadd.f32 %v143, %v540
    %v542 = vpop.f32.mrb[0].mxu0
    %v543 = vadd.f32 %v147, %v542
    %v544 = vpop.f32.mrb[0].mxu0
    %v545 = vadd.f32 %v143, %v544
    %v546 = vpop.f32.mrb[0].mxu0
    %v547 = vadd.f32 %v147, %v546
    %548 = vmatprep.mubr.bf16.mxu0 0
    %549 = vmatmul.mubr.bf16.gmra.mrb[0].mxu0 %v234
    %v550 = vpop.f32.mrb[0].mxu0
    %v551 = vadd.f32 %v143, %v550
    %v552 = vpop.f32.mrb[0].mxu0
    %v553 = vadd.f32 %v147, %v552
    %v554 = vpop.f32.mrb[0].mxu0
    %v555 = vadd.f32 %v143, %v554
    %v556 = vpop.f32.mrb[0].mxu0
    %v557 = vadd.f32 %v147, %v556
    %558 = vmatprep.mubr.bf16.mxu0 0
    %559 = vmatmul.mubr.bf16.gmra.mrb[0].mxu0 %v235
    %v560 = vpop.f32.mrb[0].mxu0
    %v561 = vadd.f32 %v143, %v560
    %v562 = vpop.f32.mrb[0].mxu0
    %v563 = vadd.f32 %v147, %v562
    %v564 = vpop.f32.mrb[0].mxu0
    %v565 = vadd.f32 %v143, %v564
    %v566 = vpop.f32.mrb[0].mxu0
    %v567 = vadd.f32 %v147, %v566
    %568 = vmatprep.mubr.bf16.mxu0 0
    %569 = vmatmul.mubr.bf16.gmra.mrb[0].mxu0 %v236
    %v570 = vpop.f32.mrb[0].mxu0
    %v571 = vadd.f32 %v143, %v570
    %v572 = vpop.f32.mrb[0].mxu0
    %v573 = vadd.f32 %v147, %v572
    %v574 = vpop.f32.mrb[0].mxu0
    %v575 = vadd.f32 %v143, %v574
    %v576 = vpop.f32.mrb[0].mxu0
    %v577 = vadd.f32 %v147, %v576
    %578 = vmatprep.mubr.bf16.mxu0 0
    %579 = vmatmul.mubr.bf16.gmra.mrb[0].mxu0 %v237
    %v580 = vpop.f32.mrb[0].mxu0
    %v581 = vadd.f32 %v143, %v580
    %v582 = vpop.f32.mrb[0].mxu0
    %v583 = vadd.f32 %v147, %v582
    %v584 = vpop.f32.mrb[0].mxu0
    %v585 = vadd.f32 %v143, %v584
    %v586 = vpop.f32.mrb[0].mxu0
    %v587 = vadd.f32 %v147, %v586
    %588 = vmatprep.mubr.bf16.mxu0 0
    %589 = vmatmul.mubr.bf16.gmra.mrb[0].mxu0 %v238
    %v590 = vpop.f32.mrb[0].mxu0
    %v591 = vadd.f32 %v143, %v590
    %v592 = vpop.f32.mrb[0].mxu0
    %v593 = vadd.f32 %v147, %v592
    %v594 = vpop.f32.mrb[0].mxu0
    %v595 = vadd.f32 %v143, %v594
    %v596 = vpop.f32.mrb[0].mxu0
    %v597 = vadd.f32 %v147, %v596
    %598 = vmatprep.mubr.bf16.mxu0 0
    %599 = vmatmul.mubr.bf16.gmra.mrb[0].mxu0 %v239
    %v600 = vpop.f32.mrb[0].mxu0
    %v601 = vadd.f32 %v143, %v600
    %v602 = vpop.f32.mrb[0].mxu0
    %v603 = vadd.f32 %v147, %v602
    %v604 = vpop.f32.mrb[0].mxu0
    %v605 = vadd.f32 %v143, %v604
    %v606 = vpop.f32.mrb[0].mxu0
    %v607 = vadd.f32 %v147, %v606
    %608 = vdwg.mxu0
    %609 = vmatprep.subr.bf16.mxu0 %v355
    %610 = vmatpush1.bf16.msra.mxu0 %v354
    %611 = vmatprep.subr.bf16.mxu0 %v359
    %612 = vmatpush1.bf16.msra.mxu0 %v358
    %613 = vmatprep.subr.bf16.mxu0 %v363
    %614 = vmatpush1.bf16.msra.mxu0 %v362
    %615 = vmatprep.subr.bf16.mxu0 %v367
    %616 = vmatpush1.bf16.msra.mxu0 %v366
    %617 = vmatprep.subr.bf16.mxu0 %v371
    %618 = vmatpush1.bf16.msra.mxu0 %v370
    %619 = vmatprep.subr.bf16.mxu0 %v375
    %620 = vmatpush1.bf16.msra.mxu0 %v374
    %621 = vmatprep.subr.bf16.mxu0 %v379
    %622 = vmatpush1.bf16.msra.mxu0 %v378
    %623 = vmatprep.subr.bf16.mxu0 %v383
    %624 = vmatpush1.bf16.msra.mxu0 %v382
    %625 = vmatprep.subr.bf16.mxu0 0
    %626 = vmatpush1.bf16.msra.mxu0 0
    %627 = vmatprep.subr.bf16.mxu0 0
    %628 = vmatpush1.bf16.msra.mxu0 0
    %629 = vmatprep.subr.bf16.mxu0 0
    %630 = vmatpush1.bf16.msra.mxu0 0
    %631 = vmatprep.subr.bf16.mxu0 0
    %632 = vmatpush1.bf16.msra.mxu0 0
    %633 = vmatprep.subr.bf16.mxu0 0
    %634 = vmatpush1.bf16.msra.mxu0 0
    %635 = vmatprep.subr.bf16.mxu0 0
    %636 = vmatpush1.bf16.msra.mxu0 0
    %637 = vmatprep.subr.bf16.mxu0 0
    %638 = vmatpush1.bf16.msra.mxu0 0
    %639 = vmatprep.subr.bf16.mxu0 0
    %640 = vmatpush1.bf16.msra.mxu0 0
    %641 = vmatprep.mubr.bf16.mxu0 0
    %642 = vmatmul.mubr.bf16.gmra.mrb[0].mxu0 %v224
    %v643 = vpop.f32.mrb[0].mxu0
    %v644 = vadd.f32 %v151, %v643
    %v645 = vpop.f32.mrb[0].mxu0
    %v646 = vadd.f32 %v155, %v645
    %v647 = vpop.f32.mrb[0].mxu0
    %v648 = vadd.f32 %v151, %v647
    %v649 = vpop.f32.mrb[0].mxu0
    %v650 = vadd.f32 %v155, %v649
    %651 = vmatprep.mubr.bf16.mxu0 0
    %652 = vmatmul.mubr.bf16.gmra.mrb[0].mxu0 %v225
    %v653 = vpop.f32.mrb[0].mxu0
    %v654 = vadd.f32 %v151, %v653
    %v655 = vpop.f32.mrb[0].mxu0
    %v656 = vadd.f32 %v155, %v655
    %v657 = vpop.f32.mrb[0].mxu0
    %v658 = vadd.f32 %v151, %v657
    %v659 = vpop.f32.mrb[0].mxu0
    %v660 = vadd.f32 %v155, %v659
    %661 = vmatprep.mubr.bf16.mxu0 0
    %662 = vmatmul.mubr.bf16.gmra.mrb[0].mxu0 %v226
    %v663 = vpop.f32.mrb[0].mxu0
    %v664 = vadd.f32 %v151, %v663
    %v665 = vpop.f32.mrb[0].mxu0
    %v666 = vadd.f32 %v155, %v665
    %v667 = vpop.f32.mrb[0].mxu0
    %v668 = vadd.f32 %v151, %v667
    %v669 = vpop.f32.mrb[0].mxu0
    %v670 = vadd.f32 %v155, %v669
    %671 = vmatprep.mubr.bf16.mxu0 0
    %672 = vmatmul.mubr.bf16.gmra.mrb[0].mxu0 %v227
    %v673 = vpop.f32.mrb[0].mxu0
    %v674 = vadd.f32 %v151, %v673
    %v675 = vpop.f32.mrb[0].mxu0
    %v676 = vadd.f32 %v155, %v675
    %v677 = vpop.f32.mrb[0].mxu0
    %v678 = vadd.f32 %v151, %v677
    %v679 = vpop.f32.mrb[0].mxu0
    %v680 = vadd.f32 %v155, %v679
    %681 = vmatprep.mubr.bf16.mxu0 0
    %682 = vmatmul.mubr.bf16.gmra.mrb[0].mxu0 %v228
    %v683 = vpop.f32.mrb[0].mxu0
    %v684 = vadd.f32 %v151, %v683
    %v685 = vpop.f32.mrb[0].mxu0
    %v686 = vadd.f32 %v155, %v685
    %v687 = vpop.f32.mrb[0].mxu0
    %v688 = vadd.f32 %v151, %v687
    %v689 = vpop.f32.mrb[0].mxu0
    %v690 = vadd.f32 %v155, %v689
    %691 = vmatprep.mubr.bf16.mxu0 0
    %692 = vmatmul.mubr.bf16.gmra.mrb[0].mxu0 %v229
    %v693 = vpop.f32.mrb[0].mxu0
    %v694 = vadd.f32 %v151, %v693
    %v695 = vpop.f32.mrb[0].mxu0
    %v696 = vadd.f32 %v155, %v695
    %v697 = vpop.f32.mrb[0].mxu0
    %v698 = vadd.f32 %v151, %v697
    %v699 = vpop.f32.mrb[0].mxu0
    %v700 = vadd.f32 %v155, %v699
    %701 = vmatprep.mubr.bf16.mxu0 0
    %702 = vmatmul.mubr.bf16.gmra.mrb[0].mxu0 %v230
    %v703 = vpop.f32.mrb[0].mxu0
    %v704 = vadd.f32 %v151, %v703
    %v705 = vpop.f32.mrb[0].mxu0
    %v706 = vadd.f32 %v155, %v705
    %v707 = vpop.f32.mrb[0].mxu0
    %v708 = vadd.f32 %v151, %v707
    %v709 = vpop.f32.mrb[0].mxu0
    %v710 = vadd.f32 %v155, %v709
    %711 = vmatprep.mubr.bf16.mxu0 0
    %712 = vmatmul.mubr.bf16.gmra.mrb[0].mxu0 %v231
    %v713 = vpop.f32.mrb[0].mxu0
    %v714 = vadd.f32 %v151, %v713
    %v715 = vpop.f32.mrb[0].mxu0
    %v716 = vadd.f32 %v155, %v715
    %v717 = vpop.f32.mrb[0].mxu0
    %v718 = vadd.f32 %v151, %v717
    %v719 = vpop.f32.mrb[0].mxu0
    %v720 = vadd.f32 %v155, %v719
    %721 = vmatprep.mubr.bf16.mxu0 0
    %722 = vmatmul.mubr.bf16.gmra.mrb[0].mxu0 %v232
    %v723 = vpop.f32.mrb[0].mxu0
    %v724 = vadd.f32 %v151, %v723
    %v725 = vpop.f32.mrb[0].mxu0
    %v726 = vadd.f32 %v155, %v725
    %v727 = vpop.f32.mrb[0].mxu0
    %v728 = vadd.f32 %v151, %v727
    %v729 = vpop.f32.mrb[0].mxu0
    %v730 = vadd.f32 %v155, %v729
    %731 = vmatprep.mubr.bf16.mxu0 0
    %732 = vmatmul.mubr.bf16.gmra.mrb[0].mxu0 %v233
    %v733 = vpop.f32.mrb[0].mxu0
    %v734 = vadd.f32 %v151, %v733
    %v735 = vpop.f32.mrb[0].mxu0
    %v736 = vadd.f32 %v155, %v735
    %v737 = vpop.f32.mrb[0].mxu0
    %v738 = vadd.f32 %v151, %v737
    %v739 = vpop.f32.mrb[0].mxu0
    %v740 = vadd.f32 %v155, %v739
    %741 = vmatprep.mubr.bf16.mxu0 0
    %742 = vmatmul.mubr.bf16.gmra.mrb[0].mxu0 %v234
    %v743 = vpop.f32.mrb[0].mxu0
    %v744 = vadd.f32 %v151, %v743
    %v745 = vpop.f32.mrb[0].mxu0
    %v746 = vadd.f32 %v155, %v745
    %v747 = vpop.f32.mrb[0].mxu0
    %v748 = vadd.f32 %v151, %v747
    %v749 = vpop.f32.mrb[0].mxu0
    %v750 = vadd.f32 %v155, %v749
    %751 = vmatprep.mubr.bf16.mxu0 0
    %752 = vmatmul.mubr.bf16.gmra.mrb[0].mxu0 %v235
    %v753 = vpop.f32.mrb[0].mxu0
    %v754 = vadd.f32 %v151, %v753
    %v755 = vpop.f32.mrb[0].mxu0
    %v756 = vadd.f32 %v155, %v755
    %v757 = vpop.f32.mrb[0].mxu0
    %v758 = vadd.f32 %v151, %v757
    %v759 = vpop.f32.mrb[0].mxu0
    %v760 = vadd.f32 %v155, %v759
    %761 = vmatprep.mubr.bf16.mxu0 0
    %762 = vmatmul.mubr.bf16.gmra.mrb[0].mxu0 %v236
    %v763 = vpop.f32.mrb[0].mxu0
    %v764 = vadd.f32 %v151, %v763
    %v765 = vpop.f32.mrb[0].mxu0
    %v766 = vadd.f32 %v155, %v765
    %v767 = vpop.f32.mrb[0].mxu0
    %v768 = vadd.f32 %v151, %v767
    %v769 = vpop.f32.mrb[0].mxu0
    %v770 = vadd.f32 %v155, %v769
    %771 = vmatprep.mubr.bf16.mxu0 0
    %772 = vmatmul.mubr.bf16.gmra.mrb[0].mxu0 %v237
    %v773 = vpop.f32.mrb[0].mxu0
    %v774 = vadd.f32 %v151, %v773
    %v775 = vpop.f32.mrb[0].mxu0
    %v776 = vadd.f32 %v155, %v775
    %v777 = vpop.f32.mrb[0].mxu0
    %v778 = vadd.f32 %v151, %v777
    %v779 = vpop.f32.mrb[0].mxu0
    %v780 = vadd.f32 %v155, %v779
    %781 = vmatprep.mubr.bf16.mxu0 0
    %782 = vmatmul.mubr.bf16.gmra.mrb[0].mxu0 %v238
    %v783 = vpop.f32.mrb[0].mxu0
    %v784 = vadd.f32 %v151, %v783
    %v785 = vpop.f32.mrb[0].mxu0
    %v786 = vadd.f32 %v155, %v785
    %v787 = vpop.f32.mrb[0].mxu0
    %v788 = vadd.f32 %v151, %v787
    %v789 = vpop.f32.mrb[0].mxu0
    %v790 = vadd.f32 %v155, %v789
    %791 = vmatprep.mubr.bf16.mxu0 0
    %792 = vmatmul.mubr.bf16.gmra.mrb[0].mxu0 %v239
    %v793 = vpop.f32.mrb[0].mxu0
    %v794 = vadd.f32 %v151, %v793
    %v795 = vpop.f32.mrb[0].mxu0
    %v796 = vadd.f32 %v155, %v795
    %v797 = vpop.f32.mrb[0].mxu0
    %v798 = vadd.f32 %v151, %v797
    %v799 = vpop.f32.mrb[0].mxu0
    %v800 = vadd.f32 %v155, %v799
    %801 = vdwg.mxu0
    %v802 = vmax.f32 %v451, 0.0
    %v803 = vmax.f32 %v453, 0.0
    %v804 = vmax.f32 %v644, 0.0
    %v805 = vmax.f32 %v646, 0.0
    %v806 = vmax.f32 %v455, 0.0
    %v807 = vmax.f32 %v457, 0.0
    %v808 = vmax.f32 %v648, 0.0
    %v809 = vmax.f32 %v650, 0.0
    %v810 = vmax.f32 %v461, 0.0
    %v811 = vmax.f32 %v463, 0.0
    %v812 = vmax.f32 %v654, 0.0
    %v813 = vmax.f32 %v656, 0.0
    %v814 = vmax.f32 %v465, 0.0
    %v815 = vmax.f32 %v467, 0.0
    %v816 = vmax.f32 %v658, 0.0
    %v817 = vmax.f32 %v660, 0.0
    %v818 = vmax.f32 %v471, 0.0
    %v819 = vmax.f32 %v473, 0.0
    %v820 = vmax.f32 %v664, 0.0
    %v821 = vmax.f32 %v666, 0.0
    %v822 = vmax.f32 %v475, 0.0
    %v823 = vmax.f32 %v477, 0.0
    %v824 = vmax.f32 %v668, 0.0
    %v825 = vmax.f32 %v670, 0.0
    %v826 = vmax.f32 %v481, 0.0
    %v827 = vmax.f32 %v483, 0.0
    %v828 = vmax.f32 %v674, 0.0
    %v829 = vmax.f32 %v676, 0.0
    %v830 = vmax.f32 %v485, 0.0
    %v831 = vmax.f32 %v487, 0.0
    %v832 = vmax.f32 %v678, 0.0
    %v833 = vmax.f32 %v680, 0.0
    %v834 = vmax.f32 %v491, 0.0
    %v835 = vmax.f32 %v493, 0.0
    %v836 = vmax.f32 %v684, 0.0
    %v837 = vmax.f32 %v686, 0.0
    %v838 = vmax.f32 %v495, 0.0
    %v839 = vmax.f32 %v497, 0.0
    %v840 = vmax.f32 %v688, 0.0
    %v841 = vmax.f32 %v690, 0.0
    %v842 = vmax.f32 %v501, 0.0
    %v843 = vmax.f32 %v503, 0.0
    %v844 = vmax.f32 %v694, 0.0
    %v845 = vmax.f32 %v696, 0.0
    %v846 = vmax.f32 %v505, 0.0
    %v847 = vmax.f32 %v507, 0.0
    %v848 = vmax.f32 %v698, 0.0
    %v849 = vmax.f32 %v700, 0.0
    %v850 = vmax.f32 %v511, 0.0
    %v851 = vmax.f32 %v513, 0.0
    %v852 = vmax.f32 %v704, 0.0
    %v853 = vmax.f32 %v706, 0.0
    %v854 = vmax.f32 %v515, 0.0
    %v855 = vmax.f32 %v517, 0.0
    %v856 = vmax.f32 %v708, 0.0
    %v857 = vmax.f32 %v710, 0.0
    %v858 = vmax.f32 %v521, 0.0
    %v859 = vmax.f32 %v523, 0.0
    %v860 = vmax.f32 %v714, 0.0
    %v861 = vmax.f32 %v716, 0.0
    %v862 = vmax.f32 %v525, 0.0
    %v863 = vmax.f32 %v527, 0.0
    %v864 = vmax.f32 %v718, 0.0
    %v865 = vmax.f32 %v720, 0.0
    %v866 = vmax.f32 %v531, 0.0
    %v867 = vmax.f32 %v533, 0.0
    %v868 = vmax.f32 %v724, 0.0
    %v869 = vmax.f32 %v726, 0.0
    %v870 = vmax.f32 %v535, 0.0
    %v871 = vmax.f32 %v537, 0.0
    %v872 = vmax.f32 %v728, 0.0
    %v873 = vmax.f32 %v730, 0.0
    %v874 = vmax.f32 %v541, 0.0
    %v875 = vmax.f32 %v543, 0.0
    %v876 = vmax.f32 %v734, 0.0
    %v877 = vmax.f32 %v736, 0.0
    %v878 = vmax.f32 %v545, 0.0
    %v879 = vmax.f32 %v547, 0.0
    %v880 = vmax.f32 %v738, 0.0
    %v881 = vmax.f32 %v740, 0.0
    %v882 = vmax.f32 %v551, 0.0
    %v883 = vmax.f32 %v553, 0.0
    %v884 = vmax.f32 %v744, 0.0
    %v885 = vmax.f32 %v746, 0.0
    %v886 = vmax.f32 %v555, 0.0
    %v887 = vmax.f32 %v557, 0.0
    %v888 = vmax.f32 %v748, 0.0
    %v889 = vmax.f32 %v750, 0.0
    %v890 = vmax.f32 %v561, 0.0
    %v891 = vmax.f32 %v563, 0.0
    %v892 = vmax.f32 %v754, 0.0
    %v893 = vmax.f32 %v756, 0.0
    %v894 = vmax.f32 %v565, 0.0
    %v895 = vmax.f32 %v567, 0.0
    %v896 = vmax.f32 %v758, 0.0
    %v897 = vmax.f32 %v760, 0.0
    %v898 = vmax.f32 %v571, 0.0
    %v899 = vmax.f32 %v573, 0.0
    %v900 = vmax.f32 %v764, 0.0
    %v901 = vmax.f32 %v766, 0.0
    %v902 = vmax.f32 %v575, 0.0
    %v903 = vmax.f32 %v577, 0.0
    %v904 = vmax.f32 %v768, 0.0
    %v905 = vmax.f32 %v770, 0.0
    %v906 = vmax.f32 %v581, 0.0
    %v907 = vmax.f32 %v583, 0.0
    %v908 = vmax.f32 %v774, 0.0
    %v909 = vmax.f32 %v776, 0.0
    %v910 = vmax.f32 %v585, 0.0
    %v911 = vmax.f32 %v587, 0.0
    %v912 = vmax.f32 %v778, 0.0
    %v913 = vmax.f32 %v780, 0.0
    %v914 = vmax.f32 %v591, 0.0
    %v915 = vmax.f32 %v593, 0.0
    %v916 = vmax.f32 %v784, 0.0
    %v917 = vmax.f32 %v786, 0.0
    %v918 = vmax.f32 %v595, 0.0
    %v919 = vmax.f32 %v597, 0.0
    %v920 = vmax.f32 %v788, 0.0
    %v921 = vmax.f32 %v790, 0.0
    %v922 = vmax.f32 %v601, 0.0
    %v923 = vmax.f32 %v603, 0.0
    %v924 = vmax.f32 %v794, 0.0
    %v925 = vmax.f32 %v796, 0.0
    %v926 = vmax.f32 %v605, 0.0
    %v927 = vmax.f32 %v607, 0.0
    %v928 = vmax.f32 %v798, 0.0
    %v929 = vmax.f32 %v800, 0.0
    %v930 = vpack.c.bf16 %v806, %v802
    %v931 = vpack.c.bf16 %v807, %v803
    %v932 = vpack.c.bf16 %v808, %v804
    %v933 = vpack.c.bf16 %v809, %v805
    %v934 = vpack.c.bf16 %v814, %v810
    %v935 = vpack.c.bf16 %v815, %v811
    %v936 = vpack.c.bf16 %v816, %v812
    %v937 = vpack.c.bf16 %v817, %v813
    %v938 = vpack.c.bf16 %v822, %v818
    %v939 = vpack.c.bf16 %v823, %v819
    %v940 = vpack.c.bf16 %v824, %v820
    %v941 = vpack.c.bf16 %v825, %v821
    %v942 = vpack.c.bf16 %v830, %v826
    %v943 = vpack.c.bf16 %v831, %v827
    %v944 = vpack.c.bf16 %v832, %v828
    %v945 = vpack.c.bf16 %v833, %v829
    %v946 = vpack.c.bf16 %v838, %v834
    %v947 = vpack.c.bf16 %v839, %v835
    %v948 = vpack.c.bf16 %v840, %v836
    %v949 = vpack.c.bf16 %v841, %v837
    %v950 = vpack.c.bf16 %v846, %v842
    %v951 = vpack.c.bf16 %v847, %v843
    %v952 = vpack.c.bf16 %v848, %v844
    %v953 = vpack.c.bf16 %v849, %v845
    %v954 = vpack.c.bf16 %v854, %v850
    %v955 = vpack.c.bf16 %v855, %v851
    %v956 = vpack.c.bf16 %v856, %v852
    %v957 = vpack.c.bf16 %v857, %v853
    %v958 = vpack.c.bf16 %v862, %v858
    %v959 = vpack.c.bf16 %v863, %v859
    %v960 = vpack.c.bf16 %v864, %v860
    %v961 = vpack.c.bf16 %v865, %v861
    %v962 = vpack.c.bf16 %v870, %v866
    %v963 = vpack.c.bf16 %v871, %v867
    %v964 = vpack.c.bf16 %v872, %v868
    %v965 = vpack.c.bf16 %v873, %v869
    %v966 = vpack.c.bf16 %v878, %v874
    %v967 = vpack.c.bf16 %v879, %v875
    %v968 = vpack.c.bf16 %v880, %v876
    %v969 = vpack.c.bf16 %v881, %v877
    %v970 = vpack.c.bf16 %v886, %v882
    %v971 = vpack.c.bf16 %v887, %v883
    %v972 = vpack.c.bf16 %v888, %v884
    %v973 = vpack.c.bf16 %v889, %v885
    %v974 = vpack.c.bf16 %v894, %v890
    %v975 = vpack.c.bf16 %v895, %v891
    %v976 = vpack.c.bf16 %v896, %v892
    %v977 = vpack.c.bf16 %v897, %v893
    %v978 = vpack.c.bf16 %v902, %v898
    %v979 = vpack.c.bf16 %v903, %v899
    %v980 = vpack.c.bf16 %v904, %v900
    %v981 = vpack.c.bf16 %v905, %v901
    %v982 = vpack.c.bf16 %v910, %v906
    %v983 = vpack.c.bf16 %v911, %v907
    %v984 = vpack.c.bf16 %v912, %v908
    %v985 = vpack.c.bf16 %v913, %v909
    %v986 = vpack.c.bf16 %v918, %v914
    %v987 = vpack.c.bf16 %v919, %v915
    %v988 = vpack.c.bf16 %v920, %v916
    %v989 = vpack.c.bf16 %v921, %v917
    %v990 = vpack.c.bf16 %v926, %v922
    %v991 = vpack.c.bf16 %v927, %v923
    %v992 = vpack.c.bf16 %v928, %v924
    %v993 = vpack.c.bf16 %v929, %v925
    %v994 = vld [vmem:[%s3] sm:$0xff]
    %v995 = vld [vmem:[%s3 + $0x8] sm:$0xff]
    %v996 = vld [vmem:[%s3 + $0x10] sm:$0xff]
    %v997 = vld [vmem:[%s3 + $0x18] sm:$0xff]
    %v998 = vld [vmem:[%s3 + $0x20] sm:$0xff]
    %v999 = vld [vmem:[%s3 + $0x28] sm:$0xff]
    %v1000 = vld [vmem:[%s3 + $0x30] sm:$0xff]
    %v1001 = vld [vmem:[%s3 + $0x38] sm:$0xff]
    %v1002 = vld [vmem:[%s3 + $0x40] sm:$0xff]
    %v1003 = vld [vmem:[%s3 + $0x48] sm:$0xff]
    %v1004 = vld [vmem:[%s3 + $0x50] sm:$0xff]
    %v1005 = vld [vmem:[%s3 + $0x58] sm:$0xff]
    %v1006 = vld [vmem:[%s3 + $0x60] sm:$0xff]
    %v1007 = vld [vmem:[%s3 + $0x68] sm:$0xff]
    %v1008 = vld [vmem:[%s3 + $0x70] sm:$0xff]
    %v1009 = vld [vmem:[%s3 + $0x78] sm:$0xff]
    %v1010 = vld [vmem:[%s3 + $0x80] sm:$0xff]
    %v1011 = vld [vmem:[%s3 + $0x88] sm:$0xff]
    %v1012 = vld [vmem:[%s3 + $0x90] sm:$0xff]
    %v1013 = vld [vmem:[%s3 + $0x98] sm:$0xff]
    %v1014 = vld [vmem:[%s3 + $0xa0] sm:$0xff]
    %v1015 = vld [vmem:[%s3 + $0xa8] sm:$0xff]
    %v1016 = vld [vmem:[%s3 + $0xb0] sm:$0xff]
    %v1017 = vld [vmem:[%s3 + $0xb8] sm:$0xff]
    %v1018 = vld [vmem:[%s3 + $0xc0] sm:$0xff]
    %v1019 = vld [vmem:[%s3 + $0xc8] sm:$0xff]
    %v1020 = vld [vmem:[%s3 + $0xd0] sm:$0xff]
    %v1021 = vld [vmem:[%s3 + $0xd8] sm:$0xff]
    %v1022 = vld [vmem:[%s3 + $0xe0] sm:$0xff]
    %v1023 = vld [vmem:[%s3 + $0xe8] sm:$0xff]
    %v1024 = vld [vmem:[%s3 + $0xf0] sm:$0xff]
    %v1025 = vld [vmem:[%s3 + $0xf8] sm:$0xff]
    %v1026 = vld [vmem:[%s3 + $0x100] sm:$0xff]
    %v1027 = vld [vmem:[%s3 + $0x108] sm:$0xff]
    %v1028 = vld [vmem:[%s3 + $0x110] sm:$0xff]
    %v1029 = vld [vmem:[%s3 + $0x118] sm:$0xff]
    %v1030 = vld [vmem:[%s3 + $0x120] sm:$0xff]
    %v1031 = vld [vmem:[%s3 + $0x128] sm:$0xff]
    %v1032 = vld [vmem:[%s3 + $0x130] sm:$0xff]
    %v1033 = vld [vmem:[%s3 + $0x138] sm:$0xff]
    %v1034 = vld [vmem:[%s3 + $0x140] sm:$0xff]
    %v1035 = vld [vmem:[%s3 + $0x148] sm:$0xff]
    %v1036 = vld [vmem:[%s3 + $0x150] sm:$0xff]
    %v1037 = vld [vmem:[%s3 + $0x158] sm:$0xff]
    %v1038 = vld [vmem:[%s3 + $0x160] sm:$0xff]
    %v1039 = vld [vmem:[%s3 + $0x168] sm:$0xff]
    %v1040 = vld [vmem:[%s3 + $0x170] sm:$0xff]
    %v1041 = vld [vmem:[%s3 + $0x178] sm:$0xff]
    %v1042 = vld [vmem:[%s3 + $0x180] sm:$0xff]
    %v1043 = vld [vmem:[%s3 + $0x188] sm:$0xff]
    %v1044 = vld [vmem:[%s3 + $0x190] sm:$0xff]
    %v1045 = vld [vmem:[%s3 + $0x198] sm:$0xff]
    %v1046 = vld [vmem:[%s3 + $0x1a0] sm:$0xff]
    %v1047 = vld [vmem:[%s3 + $0x1a8] sm:$0xff]
    %v1048 = vld [vmem:[%s3 + $0x1b0] sm:$0xff]
    %v1049 = vld [vmem:[%s3 + $0x1b8] sm:$0xff]
    %v1050 = vld [vmem:[%s3 + $0x1c0] sm:$0xff]
    %v1051 = vld [vmem:[%s3 + $0x1c8] sm:$0xff]
    %v1052 = vld [vmem:[%s3 + $0x1d0] sm:$0xff]
    %v1053 = vld [vmem:[%s3 + $0x1d8] sm:$0xff]
    %v1054 = vld [vmem:[%s3 + $0x1e0] sm:$0xff]
    %v1055 = vld [vmem:[%s3 + $0x1e8] sm:$0xff]
    %v1056 = vld [vmem:[%s3 + $0x1f0] sm:$0xff]
    %v1057 = vld [vmem:[%s3 + $0x1f8] sm:$0xff]
    %v1058 = vld [vmem:[%s4] sm:$0x3]
    %v1060 = vlaneseq
    %v1061 = vshrl.u32 %v1060, 7
    %v1062 = vsub.s32 0, %v1061
    %v1063 = vrot.slane %v1058, %v1062
    %v1064 = vlaneseq
    %v1065 = vshrl.u32 %v1064, 7
    %v1066 = vsub.s32 1, %v1065
    %v1067 = vrot.slane %v1058, %v1066
    %v1134 = vunpack.c.l.b16 %v994
    %v1135 = vunpack.c.h.b16 %v994
    %v1136 = vunpack.c.l.b16 %v995
    %v1137 = vunpack.c.h.b16 %v995
    %v1138 = vunpack.c.l.b16 %v996
    %v1139 = vunpack.c.h.b16 %v996
    %v1140 = vunpack.c.l.b16 %v997
    %v1141 = vunpack.c.h.b16 %v997
    %v1142 = vunpack.c.l.b16 %v998
    %v1143 = vunpack.c.h.b16 %v998
    %v1144 = vunpack.c.l.b16 %v999
    %v1145 = vunpack.c.h.b16 %v999
    %v1146 = vunpack.c.l.b16 %v1000
    %v1147 = vunpack.c.h.b16 %v1000
    %v1148 = vunpack.c.l.b16 %v1001
    %v1149 = vunpack.c.h.b16 %v1001
    %v1150 = vunpack.c.l.b16 %v1002
    %v1151 = vunpack.c.h.b16 %v1002
    %v1152 = vunpack.c.l.b16 %v1003
    %v1153 = vunpack.c.h.b16 %v1003
    %v1154 = vunpack.c.l.b16 %v1004
    %v1155 = vunpack.c.h.b16 %v1004
    %v1156 = vunpack.c.l.b16 %v1005
    %v1157 = vunpack.c.h.b16 %v1005
    %v1158 = vunpack.c.l.b16 %v1006
    %v1159 = vunpack.c.h.b16 %v1006
    %v1160 = vunpack.c.l.b16 %v1007
    %v1161 = vunpack.c.h.b16 %v1007
    %v1162 = vunpack.c.l.b16 %v1008
    %v1163 = vunpack.c.h.b16 %v1008
    %v1164 = vunpack.c.l.b16 %v1009
    %v1165 = vunpack.c.h.b16 %v1009
    %v1166 = vunpack.c.l.b16 %v1010
    %v1167 = vunpack.c.h.b16 %v1010
    %v1168 = vunpack.c.l.b16 %v1011
    %v1169 = vunpack.c.h.b16 %v1011
    %v1170 = vunpack.c.l.b16 %v1012
    %v1171 = vunpack.c.h.b16 %v1012
    %v1172 = vunpack.c.l.b16 %v1013
    %v1173 = vunpack.c.h.b16 %v1013
    %v1174 = vunpack.c.l.b16 %v1014
    %v1175 = vunpack.c.h.b16 %v1014
    %v1176 = vunpack.c.l.b16 %v1015
    %v1177 = vunpack.c.h.b16 %v1015
    %v1178 = vunpack.c.l.b16 %v1016
    %v1179 = vunpack.c.h.b16 %v1016
    %v1180 = vunpack.c.l.b16 %v1017
    %v1181 = vunpack.c.h.b16 %v1017
    %v1182 = vunpack.c.l.b16 %v1018
    %v1183 = vunpack.c.h.b16 %v1018
    %v1184 = vunpack.c.l.b16 %v1019
    %v1185 = vunpack.c.h.b16 %v1019
    %v1186 = vunpack.c.l.b16 %v1020
    %v1187 = vunpack.c.h.b16 %v1020
    %v1188 = vunpack.c.l.b16 %v1021
    %v1189 = vunpack.c.h.b16 %v1021
    %v1190 = vunpack.c.l.b16 %v1022
    %v1191 = vunpack.c.h.b16 %v1022
    %v1192 = vunpack.c.l.b16 %v1023
    %v1193 = vunpack.c.h.b16 %v1023
    %v1194 = vunpack.c.l.b16 %v1024
    %v1195 = vunpack.c.h.b16 %v1024
    %v1196 = vunpack.c.l.b16 %v1025
    %v1197 = vunpack.c.h.b16 %v1025
    %v1198 = vunpack.c.l.b16 %v1026
    %v1199 = vunpack.c.h.b16 %v1026
    %v1200 = vunpack.c.l.b16 %v1027
    %v1201 = vunpack.c.h.b16 %v1027
    %v1202 = vunpack.c.l.b16 %v1028
    %v1203 = vunpack.c.h.b16 %v1028
    %v1204 = vunpack.c.l.b16 %v1029
    %v1205 = vunpack.c.h.b16 %v1029
    %v1206 = vunpack.c.l.b16 %v1030
    %v1207 = vunpack.c.h.b16 %v1030
    %v1208 = vunpack.c.l.b16 %v1031
    %v1209 = vunpack.c.h.b16 %v1031
    %v1210 = vunpack.c.l.b16 %v1032
    %v1211 = vunpack.c.h.b16 %v1032
    %v1212 = vunpack.c.l.b16 %v1033
    %v1213 = vunpack.c.h.b16 %v1033
    %v1214 = vunpack.c.l.b16 %v1034
    %v1215 = vunpack.c.h.b16 %v1034
    %v1216 = vunpack.c.l.b16 %v1035
    %v1217 = vunpack.c.h.b16 %v1035
    %v1218 = vunpack.c.l.b16 %v1036
    %v1219 = vunpack.c.h.b16 %v1036
    %v1220 = vunpack.c.l.b16 %v1037
    %v1221 = vunpack.c.h.b16 %v1037
    %v1222 = vunpack.c.l.b16 %v1038
    %v1223 = vunpack.c.h.b16 %v1038
    %v1224 = vunpack.c.l.b16 %v1039
    %v1225 = vunpack.c.h.b16 %v1039
    %v1226 = vunpack.c.l.b16 %v1040
    %v1227 = vunpack.c.h.b16 %v1040
    %v1228 = vunpack.c.l.b16 %v1041
    %v1229 = vunpack.c.h.b16 %v1041
    %v1230 = vunpack.c.l.b16 %v1042
    %v1231 = vunpack.c.h.b16 %v1042
    %v1232 = vunpack.c.l.b16 %v1043
    %v1233 = vunpack.c.h.b16 %v1043
    %v1234 = vunpack.c.l.b16 %v1044
    %v1235 = vunpack.c.h.b16 %v1044
    %v1236 = vunpack.c.l.b16 %v1045
    %v1237 = vunpack.c.h.b16 %v1045
    %v1238 = vunpack.c.l.b16 %v1046
    %v1239 = vunpack.c.h.b16 %v1046
    %v1240 = vunpack.c.l.b16 %v1047
    %v1241 = vunpack.c.h.b16 %v1047
    %v1242 = vunpack.c.l.b16 %v1048
    %v1243 = vunpack.c.h.b16 %v1048
    %v1244 = vunpack.c.l.b16 %v1049
    %v1245 = vunpack.c.h.b16 %v1049
    %v1246 = vunpack.c.l.b16 %v1050
    %v1247 = vunpack.c.h.b16 %v1050
    %v1248 = vunpack.c.l.b16 %v1051
    %v1249 = vunpack.c.h.b16 %v1051
    %v1250 = vunpack.c.l.b16 %v1052
    %v1251 = vunpack.c.h.b16 %v1052
    %v1252 = vunpack.c.l.b16 %v1053
    %v1253 = vunpack.c.h.b16 %v1053
    %v1254 = vunpack.c.l.b16 %v1054
    %v1255 = vunpack.c.h.b16 %v1054
    %v1256 = vunpack.c.l.b16 %v1055
    %v1257 = vunpack.c.h.b16 %v1055
    %v1258 = vunpack.c.l.b16 %v1056
    %v1259 = vunpack.c.h.b16 %v1056
    %v1260 = vunpack.c.l.b16 %v1057
    %v1261 = vunpack.c.h.b16 %v1057
    %v1262 = vpack.c.b16 %v1136, %v1134
    %v1263 = vpack.c.b16 %v1137, %v1135
    %v1264 = vpack.c.b16 %v1140, %v1138
    %v1265 = vpack.c.b16 %v1141, %v1139
    %v1266 = vpack.c.b16 %v1144, %v1142
    %v1267 = vpack.c.b16 %v1145, %v1143
    %v1268 = vpack.c.b16 %v1148, %v1146
    %v1269 = vpack.c.b16 %v1149, %v1147
    %v1270 = vpack.c.b16 %v1152, %v1150
    %v1271 = vpack.c.b16 %v1153, %v1151
    %v1272 = vpack.c.b16 %v1156, %v1154
    %v1273 = vpack.c.b16 %v1157, %v1155
    %v1274 = vpack.c.b16 %v1160, %v1158
    %v1275 = vpack.c.b16 %v1161, %v1159
    %v1276 = vpack.c.b16 %v1164, %v1162
    %v1277 = vpack.c.b16 %v1165, %v1163
    %v1278 = vpack.c.b16 %v1168, %v1166
    %v1279 = vpack.c.b16 %v1169, %v1167
    %v1280 = vpack.c.b16 %v1172, %v1170
    %v1281 = vpack.c.b16 %v1173, %v1171
    %v1282 = vpack.c.b16 %v1176, %v1174
    %v1283 = vpack.c.b16 %v1177, %v1175
    %v1284 = vpack.c.b16 %v1180, %v1178
    %v1285 = vpack.c.b16 %v1181, %v1179
    %v1286 = vpack.c.b16 %v1184, %v1182
    %v1287 = vpack.c.b16 %v1185, %v1183
    %v1288 = vpack.c.b16 %v1188, %v1186
    %v1289 = vpack.c.b16 %v1189, %v1187
    %v1290 = vpack.c.b16 %v1192, %v1190
    %v1291 = vpack.c.b16 %v1193, %v1191
    %v1292 = vpack.c.b16 %v1196, %v1194
    %v1293 = vpack.c.b16 %v1197, %v1195
    %v1294 = vpack.c.b16 %v1200, %v1198
    %v1295 = vpack.c.b16 %v1201, %v1199
    %v1296 = vpack.c.b16 %v1204, %v1202
    %v1297 = vpack.c.b16 %v1205, %v1203
    %v1298 = vpack.c.b16 %v1208, %v1206
    %v1299 = vpack.c.b16 %v1209, %v1207
    %v1300 = vpack.c.b16 %v1212, %v1210
    %v1301 = vpack.c.b16 %v1213, %v1211
    %v1302 = vpack.c.b16 %v1216, %v1214
    %v1303 = vpack.c.b16 %v1217, %v1215
    %v1304 = vpack.c.b16 %v1220, %v1218
    %v1305 = vpack.c.b16 %v1221, %v1219
    %v1306 = vpack.c.b16 %v1224, %v1222
    %v1307 = vpack.c.b16 %v1225, %v1223
    %v1308 = vpack.c.b16 %v1228, %v1226
    %v1309 = vpack.c.b16 %v1229, %v1227
    %v1310 = vpack.c.b16 %v1232, %v1230
    %v1311 = vpack.c.b16 %v1233, %v1231
    %v1312 = vpack.c.b16 %v1236, %v1234
    %v1313 = vpack.c.b16 %v1237, %v1235
    %v1314 = vpack.c.b16 %v1240, %v1238
    %v1315 = vpack.c.b16 %v1241, %v1239
    %v1316 = vpack.c.b16 %v1244, %v1242
    %v1317 = vpack.c.b16 %v1245, %v1243
    %v1318 = vpack.c.b16 %v1248, %v1246
    %v1319 = vpack.c.b16 %v1249, %v1247
    %v1320 = vpack.c.b16 %v1252, %v1250
    %v1321 = vpack.c.b16 %v1253, %v1251
    %v1322 = vpack.c.b16 %v1256, %v1254
    %v1323 = vpack.c.b16 %v1257, %v1255
    %v1324 = vpack.c.b16 %v1260, %v1258
    %v1325 = vpack.c.b16 %v1261, %v1259
    %1390 = vmatprep.subr.bf16.mxu0 %v1263
    %1391 = vmatpush1.bf16.msra.mxu0 %v1262
    %1392 = vmatprep.subr.bf16.mxu0 %v1265
    %1393 = vmatpush1.bf16.msra.mxu0 %v1264
    %1394 = vmatprep.subr.bf16.mxu0 %v1267
    %1395 = vmatpush1.bf16.msra.mxu0 %v1266
    %1396 = vmatprep.subr.bf16.mxu0 %v1269
    %1397 = vmatpush1.bf16.msra.mxu0 %v1268
    %1398 = vmatprep.subr.bf16.mxu0 %v1271
    %1399 = vmatpush1.bf16.msra.mxu0 %v1270
    %1400 = vmatprep.subr.bf16.mxu0 %v1273
    %1401 = vmatpush1.bf16.msra.mxu0 %v1272
    %1402 = vmatprep.subr.bf16.mxu0 %v1275
    %1403 = vmatpush1.bf16.msra.mxu0 %v1274
    %1404 = vmatprep.subr.bf16.mxu0 %v1277
    %1405 = vmatpush1.bf16.msra.mxu0 %v1276
    %1406 = vmatprep.subr.bf16.mxu0 %v1279
    %1407 = vmatpush1.bf16.msra.mxu0 %v1278
    %1408 = vmatprep.subr.bf16.mxu0 %v1281
    %1409 = vmatpush1.bf16.msra.mxu0 %v1280
    %1410 = vmatprep.subr.bf16.mxu0 %v1283
    %1411 = vmatpush1.bf16.msra.mxu0 %v1282
    %1412 = vmatprep.subr.bf16.mxu0 %v1285
    %1413 = vmatpush1.bf16.msra.mxu0 %v1284
    %1414 = vmatprep.subr.bf16.mxu0 %v1287
    %1415 = vmatpush1.bf16.msra.mxu0 %v1286
    %1416 = vmatprep.subr.bf16.mxu0 %v1289
    %1417 = vmatpush1.bf16.msra.mxu0 %v1288
    %1418 = vmatprep.subr.bf16.mxu0 %v1291
    %1419 = vmatpush1.bf16.msra.mxu0 %v1290
    %1420 = vmatprep.subr.bf16.mxu0 %v1293
    %1421 = vmatpush1.bf16.msra.mxu0 %v1292
    %1422 = vmatprep.mubr.bf16.mxu0 %v931
    %1423 = vmatmul.mubr.bf16.gmra.mrb[0].mxu0 %v930
    %v1424 = vpop.f32.mrb[0].mxu0
    %v1425 = vadd.f32 %v1063, %v1424
    %v1426 = vpop.f32.mrb[0].mxu0
    %v1427 = vadd.f32 %v1067, %v1426
    %v1428 = vpop.f32.mrb[0].mxu0
    %v1429 = vadd.f32 %v1063, %v1428
    %v1430 = vpop.f32.mrb[0].mxu0
    %v1431 = vadd.f32 %v1067, %v1430
    %1432 = vmatprep.mubr.bf16.mxu0 %v935
    %1433 = vmatmul.mubr.bf16.gmra.mrb[0].mxu0 %v934
    %v1434 = vpop.f32.mrb[0].mxu0
    %v1435 = vadd.f32 %v1063, %v1434
    %v1436 = vpop.f32.mrb[0].mxu0
    %v1437 = vadd.f32 %v1067, %v1436
    %v1438 = vpop.f32.mrb[0].mxu0
    %v1439 = vadd.f32 %v1063, %v1438
    %v1440 = vpop.f32.mrb[0].mxu0
    %v1441 = vadd.f32 %v1067, %v1440
    %1442 = vmatprep.mubr.bf16.mxu0 %v939
    %1443 = vmatmul.mubr.bf16.gmra.mrb[0].mxu0 %v938
    %v1444 = vpop.f32.mrb[0].mxu0
    %v1445 = vadd.f32 %v1063, %v1444
    %v1446 = vpop.f32.mrb[0].mxu0
    %v1447 = vadd.f32 %v1067, %v1446
    %v1448 = vpop.f32.mrb[0].mxu0
    %v1449 = vadd.f32 %v1063, %v1448
    %v1450 = vpop.f32.mrb[0].mxu0
    %v1451 = vadd.f32 %v1067, %v1450
    %1452 = vmatprep.mubr.bf16.mxu0 %v943
    %1453 = vmatmul.mubr.bf16.gmra.mrb[0].mxu0 %v942
    %v1454 = vpop.f32.mrb[0].mxu0
    %v1455 = vadd.f32 %v1063, %v1454
    %v1456 = vpop.f32.mrb[0].mxu0
    %v1457 = vadd.f32 %v1067, %v1456
    %v1458 = vpop.f32.mrb[0].mxu0
    %v1459 = vadd.f32 %v1063, %v1458
    %v1460 = vpop.f32.mrb[0].mxu0
    %v1461 = vadd.f32 %v1067, %v1460
    %1462 = vmatprep.mubr.bf16.mxu0 %v947
    %1463 = vmatmul.mubr.bf16.gmra.mrb[0].mxu0 %v946
    %v1464 = vpop.f32.mrb[0].mxu0
    %v1465 = vadd.f32 %v1063, %v1464
    %v1466 = vpop.f32.mrb[0].mxu0
    %v1467 = vadd.f32 %v1067, %v1466
    %v1468 = vpop.f32.mrb[0].mxu0
    %v1469 = vadd.f32 %v1063, %v1468
    %v1470 = vpop.f32.mrb[0].mxu0
    %v1471 = vadd.f32 %v1067, %v1470
    %1472 = vmatprep.mubr.bf16.mxu0 %v951
    %1473 = vmatmul.mubr.bf16.gmra.mrb[0].mxu0 %v950
    %v1474 = vpop.f32.mrb[0].mxu0
    %v1475 = vadd.f32 %v1063, %v1474
    %v1476 = vpop.f32.mrb[0].mxu0
    %v1477 = vadd.f32 %v1067, %v1476
    %v1478 = vpop.f32.mrb[0].mxu0
    %v1479 = vadd.f32 %v1063, %v1478
    %v1480 = vpop.f32.mrb[0].mxu0
    %v1481 = vadd.f32 %v1067, %v1480
    %1482 = vmatprep.mubr.bf16.mxu0 %v955
    %1483 = vmatmul.mubr.bf16.gmra.mrb[0].mxu0 %v954
    %v1484 = vpop.f32.mrb[0].mxu0
    %v1485 = vadd.f32 %v1063, %v1484
    %v1486 = vpop.f32.mrb[0].mxu0
    %v1487 = vadd.f32 %v1067, %v1486
    %v1488 = vpop.f32.mrb[0].mxu0
    %v1489 = vadd.f32 %v1063, %v1488
    %v1490 = vpop.f32.mrb[0].mxu0
    %v1491 = vadd.f32 %v1067, %v1490
    %1492 = vmatprep.mubr.bf16.mxu0 %v959
    %1493 = vmatmul.mubr.bf16.gmra.mrb[0].mxu0 %v958
    %v1494 = vpop.f32.mrb[0].mxu0
    %v1495 = vadd.f32 %v1063, %v1494
    %v1496 = vpop.f32.mrb[0].mxu0
    %v1497 = vadd.f32 %v1067, %v1496
    %v1498 = vpop.f32.mrb[0].mxu0
    %v1499 = vadd.f32 %v1063, %v1498
    %v1500 = vpop.f32.mrb[0].mxu0
    %v1501 = vadd.f32 %v1067, %v1500
    %1502 = vmatprep.mubr.bf16.mxu0 %v963
    %1503 = vmatmul.mubr.bf16.gmra.mrb[0].mxu0 %v962
    %v1504 = vpop.f32.mrb[0].mxu0
    %v1505 = vadd.f32 %v1063, %v1504
    %v1506 = vpop.f32.mrb[0].mxu0
    %v1507 = vadd.f32 %v1067, %v1506
    %v1508 = vpop.f32.mrb[0].mxu0
    %v1509 = vadd.f32 %v1063, %v1508
    %v1510 = vpop.f32.mrb[0].mxu0
    %v1511 = vadd.f32 %v1067, %v1510
    %1512 = vmatprep.mubr.bf16.mxu0 %v967
    %1513 = vmatmul.mubr.bf16.gmra.mrb[0].mxu0 %v966
    %v1514 = vpop.f32.mrb[0].mxu0
    %v1515 = vadd.f32 %v1063, %v1514
    %v1516 = vpop.f32.mrb[0].mxu0
    %v1517 = vadd.f32 %v1067, %v1516
    %v1518 = vpop.f32.mrb[0].mxu0
    %v1519 = vadd.f32 %v1063, %v1518
    %v1520 = vpop.f32.mrb[0].mxu0
    %v1521 = vadd.f32 %v1067, %v1520
    %1522 = vmatprep.mubr.bf16.mxu0 %v971
    %1523 = vmatmul.mubr.bf16.gmra.mrb[0].mxu0 %v970
    %v1524 = vpop.f32.mrb[0].mxu0
    %v1525 = vadd.f32 %v1063, %v1524
    %v1526 = vpop.f32.mrb[0].mxu0
    %v1527 = vadd.f32 %v1067, %v1526
    %v1528 = vpop.f32.mrb[0].mxu0
    %v1529 = vadd.f32 %v1063, %v1528
    %v1530 = vpop.f32.mrb[0].mxu0
    %v1531 = vadd.f32 %v1067, %v1530
    %1532 = vmatprep.mubr.bf16.mxu0 %v975
    %1533 = vmatmul.mubr.bf16.gmra.mrb[0].mxu0 %v974
    %v1534 = vpop.f32.mrb[0].mxu0
    %v1535 = vadd.f32 %v1063, %v1534
    %v1536 = vpop.f32.mrb[0].mxu0
    %v1537 = vadd.f32 %v1067, %v1536
    %v1538 = vpop.f32.mrb[0].mxu0
    %v1539 = vadd.f32 %v1063, %v1538
    %v1540 = vpop.f32.mrb[0].mxu0
    %v1541 = vadd.f32 %v1067, %v1540
    %1542 = vmatprep.mubr.bf16.mxu0 %v979
    %1543 = vmatmul.mubr.bf16.gmra.mrb[0].mxu0 %v978
    %v1544 = vpop.f32.mrb[0].mxu0
    %v1545 = vadd.f32 %v1063, %v1544
    %v1546 = vpop.f32.mrb[0].mxu0
    %v1547 = vadd.f32 %v1067, %v1546
    %v1548 = vpop.f32.mrb[0].mxu0
    %v1549 = vadd.f32 %v1063, %v1548
    %v1550 = vpop.f32.mrb[0].mxu0
    %v1551 = vadd.f32 %v1067, %v1550
    %1552 = vmatprep.mubr.bf16.mxu0 %v983
    %1553 = vmatmul.mubr.bf16.gmra.mrb[0].mxu0 %v982
    %v1554 = vpop.f32.mrb[0].mxu0
    %v1555 = vadd.f32 %v1063, %v1554
    %v1556 = vpop.f32.mrb[0].mxu0
    %v1557 = vadd.f32 %v1067, %v1556
    %v1558 = vpop.f32.mrb[0].mxu0
    %v1559 = vadd.f32 %v1063, %v1558
    %v1560 = vpop.f32.mrb[0].mxu0
    %v1561 = vadd.f32 %v1067, %v1560
    %1562 = vmatprep.mubr.bf16.mxu0 %v987
    %1563 = vmatmul.mubr.bf16.gmra.mrb[0].mxu0 %v986
    %v1564 = vpop.f32.mrb[0].mxu0
    %v1565 = vadd.f32 %v1063, %v1564
    %v1566 = vpop.f32.mrb[0].mxu0
    %v1567 = vadd.f32 %v1067, %v1566
    %v1568 = vpop.f32.mrb[0].mxu0
    %v1569 = vadd.f32 %v1063, %v1568
    %v1570 = vpop.f32.mrb[0].mxu0
    %v1571 = vadd.f32 %v1067, %v1570
    %1572 = vmatprep.mubr.bf16.mxu0 %v991
    %1573 = vmatmul.mubr.bf16.gmra.mrb[0].mxu0 %v990
    %v1574 = vpop.f32.mrb[0].mxu0
    %v1575 = vadd.f32 %v1063, %v1574
    %v1576 = vpop.f32.mrb[0].mxu0
    %v1577 = vadd.f32 %v1067, %v1576
    %v1578 = vpop.f32.mrb[0].mxu0
    %v1579 = vadd.f32 %v1063, %v1578
    %v1580 = vpop.f32.mrb[0].mxu0
    %v1581 = vadd.f32 %v1067, %v1580
    %1582 = vdwg.mxu0
    %1583 = vmatprep.subr.bf16.mxu0 %v1295
    %1584 = vmatpush1.bf16.msra.mxu0 %v1294
    %1585 = vmatprep.subr.bf16.mxu0 %v1297
    %1586 = vmatpush1.bf16.msra.mxu0 %v1296
    %1587 = vmatprep.subr.bf16.mxu0 %v1299
    %1588 = vmatpush1.bf16.msra.mxu0 %v1298
    %1589 = vmatprep.subr.bf16.mxu0 %v1301
    %1590 = vmatpush1.bf16.msra.mxu0 %v1300
    %1591 = vmatprep.subr.bf16.mxu0 %v1303
    %1592 = vmatpush1.bf16.msra.mxu0 %v1302
    %1593 = vmatprep.subr.bf16.mxu0 %v1305
    %1594 = vmatpush1.bf16.msra.mxu0 %v1304
    %1595 = vmatprep.subr.bf16.mxu0 %v1307
    %1596 = vmatpush1.bf16.msra.mxu0 %v1306
    %1597 = vmatprep.subr.bf16.mxu0 %v1309
    %1598 = vmatpush1.bf16.msra.mxu0 %v1308
    %1599 = vmatprep.subr.bf16.mxu0 %v1311
    %1600 = vmatpush1.bf16.msra.mxu0 %v1310
    %1601 = vmatprep.subr.bf16.mxu0 %v1313
    %1602 = vmatpush1.bf16.msra.mxu0 %v1312
    %1603 = vmatprep.subr.bf16.mxu0 %v1315
    %1604 = vmatpush1.bf16.msra.mxu0 %v1314
    %1605 = vmatprep.subr.bf16.mxu0 %v1317
    %1606 = vmatpush1.bf16.msra.mxu0 %v1316
    %1607 = vmatprep.subr.bf16.mxu0 %v1319
    %1608 = vmatpush1.bf16.msra.mxu0 %v1318
    %1609 = vmatprep.subr.bf16.mxu0 %v1321
    %1610 = vmatpush1.bf16.msra.mxu0 %v1320
    %1611 = vmatprep.subr.bf16.mxu0 %v1323
    %1612 = vmatpush1.bf16.msra.mxu0 %v1322
    %1613 = vmatprep.subr.bf16.mxu0 %v1325
    %1614 = vmatpush1.bf16.msra.mxu0 %v1324
    %1615 = vmatprep.mubr.bf16.mxu0 %v933
    %1616 = vmatmul.mubr.bf16.gmra.mrb[0].mxu0 %v932
    %v1617 = vpop.f32.mrb[0].mxu0
    %v1618 = vadd.f32 %v1425, %v1617
    %v1619 = vpop.f32.mrb[0].mxu0
    %v1620 = vadd.f32 %v1427, %v1619
    %v1621 = vpop.f32.mrb[0].mxu0
    %v1622 = vadd.f32 %v1429, %v1621
    %v1623 = vpop.f32.mrb[0].mxu0
    %v1624 = vadd.f32 %v1431, %v1623
    %1625 = vmatprep.mubr.bf16.mxu0 %v937
    %1626 = vmatmul.mubr.bf16.gmra.mrb[0].mxu0 %v936
    %v1627 = vpop.f32.mrb[0].mxu0
    %v1628 = vadd.f32 %v1435, %v1627
    %v1629 = vpop.f32.mrb[0].mxu0
    %v1630 = vadd.f32 %v1437, %v1629
    %v1631 = vpop.f32.mrb[0].mxu0
    %v1632 = vadd.f32 %v1439, %v1631
    %v1633 = vpop.f32.mrb[0].mxu0
    %v1634 = vadd.f32 %v1441, %v1633
    %1635 = vmatprep.mubr.bf16.mxu0 %v941
    %1636 = vmatmul.mubr.bf16.gmra.mrb[0].mxu0 %v940
    %v1637 = vpop.f32.mrb[0].mxu0
    %v1638 = vadd.f32 %v1445, %v1637
    %v1639 = vpop.f32.mrb[0].mxu0
    %v1640 = vadd.f32 %v1447, %v1639
    %v1641 = vpop.f32.mrb[0].mxu0
    %v1642 = vadd.f32 %v1449, %v1641
    %v1643 = vpop.f32.mrb[0].mxu0
    %v1644 = vadd.f32 %v1451, %v1643
    %1645 = vmatprep.mubr.bf16.mxu0 %v945
    %1646 = vmatmul.mubr.bf16.gmra.mrb[0].mxu0 %v944
    %v1647 = vpop.f32.mrb[0].mxu0
    %v1648 = vadd.f32 %v1455, %v1647
    %v1649 = vpop.f32.mrb[0].mxu0
    %v1650 = vadd.f32 %v1457, %v1649
    %v1651 = vpop.f32.mrb[0].mxu0
    %v1652 = vadd.f32 %v1459, %v1651
    %v1653 = vpop.f32.mrb[0].mxu0
    %v1654 = vadd.f32 %v1461, %v1653
    %1655 = vmatprep.mubr.bf16.mxu0 %v949
    %1656 = vmatmul.mubr.bf16.gmra.mrb[0].mxu0 %v948
    %v1657 = vpop.f32.mrb[0].mxu0
    %v1658 = vadd.f32 %v1465, %v1657
    %v1659 = vpop.f32.mrb[0].mxu0
    %v1660 = vadd.f32 %v1467, %v1659
    %v1661 = vpop.f32.mrb[0].mxu0
    %v1662 = vadd.f32 %v1469, %v1661
    %v1663 = vpop.f32.mrb[0].mxu0
    %v1664 = vadd.f32 %v1471, %v1663
    %1665 = vmatprep.mubr.bf16.mxu0 %v953
    %1666 = vmatmul.mubr.bf16.gmra.mrb[0].mxu0 %v952
    %v1667 = vpop.f32.mrb[0].mxu0
    %v1668 = vadd.f32 %v1475, %v1667
    %v1669 = vpop.f32.mrb[0].mxu0
    %v1670 = vadd.f32 %v1477, %v1669
    %v1671 = vpop.f32.mrb[0].mxu0
    %v1672 = vadd.f32 %v1479, %v1671
    %v1673 = vpop.f32.mrb[0].mxu0
    %v1674 = vadd.f32 %v1481, %v1673
    %1675 = vmatprep.mubr.bf16.mxu0 %v957
    %1676 = vmatmul.mubr.bf16.gmra.mrb[0].mxu0 %v956
    %v1677 = vpop.f32.mrb[0].mxu0
    %v1678 = vadd.f32 %v1485, %v1677
    %v1679 = vpop.f32.mrb[0].mxu0
    %v1680 = vadd.f32 %v1487, %v1679
    %v1681 = vpop.f32.mrb[0].mxu0
    %v1682 = vadd.f32 %v1489, %v1681
    %v1683 = vpop.f32.mrb[0].mxu0
    %v1684 = vadd.f32 %v1491, %v1683
    %1685 = vmatprep.mubr.bf16.mxu0 %v961
    %1686 = vmatmul.mubr.bf16.gmra.mrb[0].mxu0 %v960
    %v1687 = vpop.f32.mrb[0].mxu0
    %v1688 = vadd.f32 %v1495, %v1687
    %v1689 = vpop.f32.mrb[0].mxu0
    %v1690 = vadd.f32 %v1497, %v1689
    %v1691 = vpop.f32.mrb[0].mxu0
    %v1692 = vadd.f32 %v1499, %v1691
    %v1693 = vpop.f32.mrb[0].mxu0
    %v1694 = vadd.f32 %v1501, %v1693
    %1695 = vmatprep.mubr.bf16.mxu0 %v965
    %1696 = vmatmul.mubr.bf16.gmra.mrb[0].mxu0 %v964
    %v1697 = vpop.f32.mrb[0].mxu0
    %v1698 = vadd.f32 %v1505, %v1697
    %v1699 = vpop.f32.mrb[0].mxu0
    %v1700 = vadd.f32 %v1507, %v1699
    %v1701 = vpop.f32.mrb[0].mxu0
    %v1702 = vadd.f32 %v1509, %v1701
    %v1703 = vpop.f32.mrb[0].mxu0
    %v1704 = vadd.f32 %v1511, %v1703
    %1705 = vmatprep.mubr.bf16.mxu0 %v969
    %1706 = vmatmul.mubr.bf16.gmra.mrb[0].mxu0 %v968
    %v1707 = vpop.f32.mrb[0].mxu0
    %v1708 = vadd.f32 %v1515, %v1707
    %v1709 = vpop.f32.mrb[0].mxu0
    %v1710 = vadd.f32 %v1517, %v1709
    %v1711 = vpop.f32.mrb[0].mxu0
    %v1712 = vadd.f32 %v1519, %v1711
    %v1713 = vpop.f32.mrb[0].mxu0
    %v1714 = vadd.f32 %v1521, %v1713
    %1715 = vmatprep.mubr.bf16.mxu0 %v973
    %1716 = vmatmul.mubr.bf16.gmra.mrb[0].mxu0 %v972
    %v1717 = vpop.f32.mrb[0].mxu0
    %v1718 = vadd.f32 %v1525, %v1717
    %v1719 = vpop.f32.mrb[0].mxu0
    %v1720 = vadd.f32 %v1527, %v1719
    %v1721 = vpop.f32.mrb[0].mxu0
    %v1722 = vadd.f32 %v1529, %v1721
    %v1723 = vpop.f32.mrb[0].mxu0
    %v1724 = vadd.f32 %v1531, %v1723
    %1725 = vmatprep.mubr.bf16.mxu0 %v977
    %1726 = vmatmul.mubr.bf16.gmra.mrb[0].mxu0 %v976
    %v1727 = vpop.f32.mrb[0].mxu0
    %v1728 = vadd.f32 %v1535, %v1727
    %v1729 = vpop.f32.mrb[0].mxu0
    %v1730 = vadd.f32 %v1537, %v1729
    %v1731 = vpop.f32.mrb[0].mxu0
    %v1732 = vadd.f32 %v1539, %v1731
    %v1733 = vpop.f32.mrb[0].mxu0
    %v1734 = vadd.f32 %v1541, %v1733
    %1735 = vmatprep.mubr.bf16.mxu0 %v981
    %1736 = vmatmul.mubr.bf16.gmra.mrb[0].mxu0 %v980
    %v1737 = vpop.f32.mrb[0].mxu0
    %v1738 = vadd.f32 %v1545, %v1737
    %v1739 = vpop.f32.mrb[0].mxu0
    %v1740 = vadd.f32 %v1547, %v1739
    %v1741 = vpop.f32.mrb[0].mxu0
    %v1742 = vadd.f32 %v1549, %v1741
    %v1743 = vpop.f32.mrb[0].mxu0
    %v1744 = vadd.f32 %v1551, %v1743
    %1745 = vmatprep.mubr.bf16.mxu0 %v985
    %1746 = vmatmul.mubr.bf16.gmra.mrb[0].mxu0 %v984
    %v1747 = vpop.f32.mrb[0].mxu0
    %v1748 = vadd.f32 %v1555, %v1747
    %v1749 = vpop.f32.mrb[0].mxu0
    %v1750 = vadd.f32 %v1557, %v1749
    %v1751 = vpop.f32.mrb[0].mxu0
    %v1752 = vadd.f32 %v1559, %v1751
    %v1753 = vpop.f32.mrb[0].mxu0
    %v1754 = vadd.f32 %v1561, %v1753
    %1755 = vmatprep.mubr.bf16.mxu0 %v989
    %1756 = vmatmul.mubr.bf16.gmra.mrb[0].mxu0 %v988
    %v1757 = vpop.f32.mrb[0].mxu0
    %v1758 = vadd.f32 %v1565, %v1757
    %v1759 = vpop.f32.mrb[0].mxu0
    %v1760 = vadd.f32 %v1567, %v1759
    %v1761 = vpop.f32.mrb[0].mxu0
    %v1762 = vadd.f32 %v1569, %v1761
    %v1763 = vpop.f32.mrb[0].mxu0
    %v1764 = vadd.f32 %v1571, %v1763
    %1765 = vmatprep.mubr.bf16.mxu0 %v993
    %1766 = vmatmul.mubr.bf16.gmra.mrb[0].mxu0 %v992
    %v1767 = vpop.f32.mrb[0].mxu0
    %v1768 = vadd.f32 %v1575, %v1767
    %v1769 = vpop.f32.mrb[0].mxu0
    %v1770 = vadd.f32 %v1577, %v1769
    %v1771 = vpop.f32.mrb[0].mxu0
    %v1772 = vadd.f32 %v1579, %v1771
    %v1773 = vpop.f32.mrb[0].mxu0
    %v1774 = vadd.f32 %v1581, %v1773
    %1775 = vdwg.mxu0
    %v1776 = vmax.f32 %v1618, 0.0
    %v1777 = vmax.f32 %v1620, 0.0
    %v1778 = vmax.f32 %v1622, 0.0
    %v1779 = vmax.f32 %v1624, 0.0
    %v1780 = vmax.f32 %v1628, 0.0
    %v1781 = vmax.f32 %v1630, 0.0
    %v1782 = vmax.f32 %v1632, 0.0
    %v1783 = vmax.f32 %v1634, 0.0
    %v1784 = vmax.f32 %v1638, 0.0
    %v1785 = vmax.f32 %v1640, 0.0
    %v1786 = vmax.f32 %v1642, 0.0
    %v1787 = vmax.f32 %v1644, 0.0
    %v1788 = vmax.f32 %v1648, 0.0
    %v1789 = vmax.f32 %v1650, 0.0
    %v1790 = vmax.f32 %v1652, 0.0
    %v1791 = vmax.f32 %v1654, 0.0
    %v1792 = vmax.f32 %v1658, 0.0
    %v1793 = vmax.f32 %v1660, 0.0
    %v1794 = vmax.f32 %v1662, 0.0
    %v1795 = vmax.f32 %v1664, 0.0
    %v1796 = vmax.f32 %v1668, 0.0
    %v1797 = vmax.f32 %v1670, 0.0
    %v1798 = vmax.f32 %v1672, 0.0
    %v1799 = vmax.f32 %v1674, 0.0
    %v1800 = vmax.f32 %v1678, 0.0
    %v1801 = vmax.f32 %v1680, 0.0
    %v1802 = vmax.f32 %v1682, 0.0
    %v1803 = vmax.f32 %v1684, 0.0
    %v1804 = vmax.f32 %v1688, 0.0
    %v1805 = vmax.f32 %v1690, 0.0
    %v1806 = vmax.f32 %v1692, 0.0
    %v1807 = vmax.f32 %v1694, 0.0
    %v1808 = vmax.f32 %v1698, 0.0
    %v1809 = vmax.f32 %v1700, 0.0
    %v1810 = vmax.f32 %v1702, 0.0
    %v1811 = vmax.f32 %v1704, 0.0
    %v1812 = vmax.f32 %v1708, 0.0
    %v1813 = vmax.f32 %v1710, 0.0
    %v1814 = vmax.f32 %v1712, 0.0
    %v1815 = vmax.f32 %v1714, 0.0
    %v1816 = vmax.f32 %v1718, 0.0
    %v1817 = vmax.f32 %v1720, 0.0
    %v1818 = vmax.f32 %v1722, 0.0
    %v1819 = vmax.f32 %v1724, 0.0
    %v1820 = vmax.f32 %v1728, 0.0
    %v1821 = vmax.f32 %v1730, 0.0
    %v1822 = vmax.f32 %v1732, 0.0
    %v1823 = vmax.f32 %v1734, 0.0
    %v1824 = vmax.f32 %v1738, 0.0
    %v1825 = vmax.f32 %v1740, 0.0
    %v1826 = vmax.f32 %v1742, 0.0
    %v1827 = vmax.f32 %v1744, 0.0
    %v1828 = vmax.f32 %v1748, 0.0
    %v1829 = vmax.f32 %v1750, 0.0
    %v1830 = vmax.f32 %v1752, 0.0
    %v1831 = vmax.f32 %v1754, 0.0
    %v1832 = vmax.f32 %v1758, 0.0
    %v1833 = vmax.f32 %v1760, 0.0
    %v1834 = vmax.f32 %v1762, 0.0
    %v1835 = vmax.f32 %v1764, 0.0
    %v1836 = vmax.f32 %v1768, 0.0
    %v1837 = vmax.f32 %v1770, 0.0
    %v1838 = vmax.f32 %v1772, 0.0
    %v1839 = vmax.f32 %v1774, 0.0
    %v1840 = vpack.c.bf16 %v1778, %v1776
    %v1841 = vpack.c.bf16 %v1779, %v1777
    %v1842 = vpack.c.bf16 %v1782, %v1780
    %v1843 = vpack.c.bf16 %v1783, %v1781
    %v1844 = vpack.c.bf16 %v1786, %v1784
    %v1845 = vpack.c.bf16 %v1787, %v1785
    %v1846 = vpack.c.bf16 %v1790, %v1788
    %v1847 = vpack.c.bf16 %v1791, %v1789
    %v1848 = vpack.c.bf16 %v1794, %v1792
    %v1849 = vpack.c.bf16 %v1795, %v1793
    %v1850 = vpack.c.bf16 %v1798, %v1796
    %v1851 = vpack.c.bf16 %v1799, %v1797
    %v1852 = vpack.c.bf16 %v1802, %v1800
    %v1853 = vpack.c.bf16 %v1803, %v1801
    %v1854 = vpack.c.bf16 %v1806, %v1804
    %v1855 = vpack.c.bf16 %v1807, %v1805
    %v1856 = vpack.c.bf16 %v1810, %v1808
    %v1857 = vpack.c.bf16 %v1811, %v1809
    %v1858 = vpack.c.bf16 %v1814, %v1812
    %v1859 = vpack.c.bf16 %v1815, %v1813
    %v1860 = vpack.c.bf16 %v1818, %v1816
    %v1861 = vpack.c.bf16 %v1819, %v1817
    %v1862 = vpack.c.bf16 %v1822, %v1820
    %v1863 = vpack.c.bf16 %v1823, %v1821
    %v1864 = vpack.c.bf16 %v1826, %v1824
    %v1865 = vpack.c.bf16 %v1827, %v1825
    %v1866 = vpack.c.bf16 %v1830, %v1828
    %v1867 = vpack.c.bf16 %v1831, %v1829
    %v1868 = vpack.c.bf16 %v1834, %v1832
    %v1869 = vpack.c.bf16 %v1835, %v1833
    %v1870 = vpack.c.bf16 %v1838, %v1836
    %v1871 = vpack.c.bf16 %v1839, %v1837
    %v1872 = vld [vmem:[#allocation4] sm:$0xf]
    %v1873 = vld [vmem:[#allocation4 + $0x4] sm:$0xf]
    %v1874 = vld [vmem:[#allocation4 + $0x8] sm:$0xf]
    %v1875 = vld [vmem:[#allocation4 + $0xc] sm:$0xf]
    %v1876 = vld [vmem:[#allocation4 + $0x10] sm:$0xf]
    %v1877 = vld [vmem:[#allocation4 + $0x14] sm:$0xf]
    %v1878 = vld [vmem:[#allocation4 + $0x18] sm:$0xf]
    %v1879 = vld [vmem:[#allocation4 + $0x1c] sm:$0xf]
    %v1880 = vld [vmem:[#allocation4 + $0x20] sm:$0xf]
    %v1881 = vld [vmem:[#allocation4 + $0x24] sm:$0xf]
    %v1882 = vld [vmem:[#allocation4 + $0x28] sm:$0xf]
    %v1883 = vld [vmem:[#allocation4 + $0x2c] sm:$0xf]
    %v1884 = vld [vmem:[#allocation4 + $0x30] sm:$0xf]
    %v1885 = vld [vmem:[#allocation4 + $0x34] sm:$0xf]
    %v1886 = vld [vmem:[#allocation4 + $0x38] sm:$0xf]
    %v1887 = vld [vmem:[#allocation4 + $0x3c] sm:$0xf]
    %v1888 = vld [vmem:[#allocation4 + $0x40] sm:$0xf]
    %v1889 = vld [vmem:[#allocation4 + $0x44] sm:$0xf]
    %v1890 = vld [vmem:[#allocation4 + $0x48] sm:$0xf]
    %v1891 = vld [vmem:[#allocation4 + $0x4c] sm:$0xf]
    %v1892 = vld [vmem:[#allocation4 + $0x50] sm:$0xf]
    %v1893 = vld [vmem:[#allocation4 + $0x54] sm:$0xf]
    %v1894 = vld [vmem:[#allocation4 + $0x58] sm:$0xf]
    %v1895 = vld [vmem:[#allocation4 + $0x5c] sm:$0xf]
    %v1896 = vld [vmem:[#allocation4 + $0x60] sm:$0xf]
    %v1897 = vld [vmem:[#allocation4 + $0x64] sm:$0xf]
    %v1898 = vld [vmem:[#allocation4 + $0x68] sm:$0xf]
    %v1899 = vld [vmem:[#allocation4 + $0x6c] sm:$0xf]
    %v1900 = vld [vmem:[#allocation4 + $0x70] sm:$0xf]
    %v1901 = vld [vmem:[#allocation4 + $0x74] sm:$0xf]
    %v1902 = vld [vmem:[#allocation4 + $0x78] sm:$0xf]
    %v1903 = vld [vmem:[#allocation4 + $0x7c] sm:$0xf]
    %v1904 = vld [vmem:[%s6] sm:$0x1]
    %v1906 = vlaneseq
    %v1907 = vshrl.u32 %v1906, 7
    %v1908 = vsub.s32 0, %v1907
    %v1909 = vrot.slane %v1904, %v1908
    %v1943 = vunpack.c.l.b16 %v1872
    %v1944 = vunpack.c.l.b16 %v1873
    %v1945 = vunpack.c.l.b16 %v1874
    %v1946 = vunpack.c.l.b16 %v1875
    %v1947 = vunpack.c.l.b16 %v1876
    %v1948 = vunpack.c.l.b16 %v1877
    %v1949 = vunpack.c.l.b16 %v1878
    %v1950 = vunpack.c.l.b16 %v1879
    %v1951 = vunpack.c.l.b16 %v1880
    %v1952 = vunpack.c.l.b16 %v1881
    %v1953 = vunpack.c.l.b16 %v1882
    %v1954 = vunpack.c.l.b16 %v1883
    %v1955 = vunpack.c.l.b16 %v1884
    %v1956 = vunpack.c.l.b16 %v1885
    %v1957 = vunpack.c.l.b16 %v1886
    %v1958 = vunpack.c.l.b16 %v1887
    %v1959 = vunpack.c.l.b16 %v1888
    %v1960 = vunpack.c.l.b16 %v1889
    %v1961 = vunpack.c.l.b16 %v1890
    %v1962 = vunpack.c.l.b16 %v1891
    %v1963 = vunpack.c.l.b16 %v1892
    %v1964 = vunpack.c.l.b16 %v1893
    %v1965 = vunpack.c.l.b16 %v1894
    %v1966 = vunpack.c.l.b16 %v1895
    %v1967 = vunpack.c.l.b16 %v1896
    %v1968 = vunpack.c.l.b16 %v1897
    %v1969 = vunpack.c.l.b16 %v1898
    %v1970 = vunpack.c.l.b16 %v1899
    %v1971 = vunpack.c.l.b16 %v1900
    %v1972 = vunpack.c.l.b16 %v1901
    %v1973 = vunpack.c.l.b16 %v1902
    %v1974 = vunpack.c.l.b16 %v1903
    %v1975 = vpack.c.b16 %v1944, %v1943
    %v1976 = vpack.c.b16 %v1946, %v1945
    %v1977 = vpack.c.b16 %v1948, %v1947
    %v1978 = vpack.c.b16 %v1950, %v1949
    %v1979 = vpack.c.b16 %v1952, %v1951
    %v1980 = vpack.c.b16 %v1954, %v1953
    %v1981 = vpack.c.b16 %v1956, %v1955
    %v1982 = vpack.c.b16 %v1958, %v1957
    %v1983 = vpack.c.b16 %v1960, %v1959
    %v1984 = vpack.c.b16 %v1962, %v1961
    %v1985 = vpack.c.b16 %v1964, %v1963
    %v1986 = vpack.c.b16 %v1966, %v1965
    %v1987 = vpack.c.b16 %v1968, %v1967
    %v1988 = vpack.c.b16 %v1970, %v1969
    %v1989 = vpack.c.b16 %v1972, %v1971
    %v1990 = vpack.c.b16 %v1974, %v1973
    %2007 = vmatprep.subr.bf16.mxu0 0
    %2008 = vmatpush1.bf16.msra.mxu0 %v1975
    %2009 = vmatprep.subr.bf16.mxu0 0
    %2010 = vmatpush1.bf16.msra.mxu0 %v1976
    %2011 = vmatprep.subr.bf16.mxu0 0
    %2012 = vmatpush1.bf16.msra.mxu0 %v1977
    %2013 = vmatprep.subr.bf16.mxu0 0
    %2014 = vmatpush1.bf16.msra.mxu0 %v1978
    %2015 = vmatprep.subr.bf16.mxu0 0
    %2016 = vmatpush1.bf16.msra.mxu0 %v1979
    %2017 = vmatprep.subr.bf16.mxu0 0
    %2018 = vmatpush1.bf16.msra.mxu0 %v1980
    %2019 = vmatprep.subr.bf16.mxu0 0
    %2020 = vmatpush1.bf16.msra.mxu0 %v1981
    %2021 = vmatprep.subr.bf16.mxu0 0
    %2022 = vmatpush1.bf16.msra.mxu0 %v1982
    %2023 = vmatprep.subr.bf16.mxu0 0
    %2024 = vmatpush1.bf16.msra.mxu0 %v1983
    %2025 = vmatprep.subr.bf16.mxu0 0
    %2026 = vmatpush1.bf16.msra.mxu0 %v1984
    %2027 = vmatprep.subr.bf16.mxu0 0
    %2028 = vmatpush1.bf16.msra.mxu0 %v1985
    %2029 = vmatprep.subr.bf16.mxu0 0
    %2030 = vmatpush1.bf16.msra.mxu0 %v1986
    %2031 = vmatprep.subr.bf16.mxu0 0
    %2032 = vmatpush1.bf16.msra.mxu0 %v1987
    %2033 = vmatprep.subr.bf16.mxu0 0
    %2034 = vmatpush1.bf16.msra.mxu0 %v1988
    %2035 = vmatprep.subr.bf16.mxu0 0
    %2036 = vmatpush1.bf16.msra.mxu0 %v1989
    %2037 = vmatprep.subr.bf16.mxu0 0
    %2038 = vmatpush1.bf16.msra.mxu0 %v1990
    %2039 = vmatprep.mubr.bf16.mxu0 %v1841
    %2040 = vmatmul.mubr.bf16.gmra.mrb[0].mxu0 %v1840
    %v2041 = vpop.f32.mrb[0].mxu0
    %v2042 = vadd.f32 %v1909, %v2041
    %v2043 = vpop.f32.mrb[0].mxu0
    %v2044 = vpop.f32.mrb[0].mxu0
    %v2045 = vadd.f32 %v1909, %v2044
    %v2046 = vpop.f32.mrb[0].mxu0
    %2047 = vmatprep.mubr.bf16.mxu0 %v1843
    %2048 = vmatmul.mubr.bf16.gmra.mrb[0].mxu0 %v1842
    %v2049 = vpop.f32.mrb[0].mxu0
    %v2050 = vadd.f32 %v1909, %v2049
    %v2051 = vpop.f32.mrb[0].mxu0
    %v2052 = vpop.f32.mrb[0].mxu0
    %v2053 = vadd.f32 %v1909, %v2052
    %v2054 = vpop.f32.mrb[0].mxu0
    %2055 = vmatprep.mubr.bf16.mxu0 %v1845
    %2056 = vmatmul.mubr.bf16.gmra.mrb[0].mxu0 %v1844
    %v2057 = vpop.f32.mrb[0].mxu0
    %v2058 = vadd.f32 %v1909, %v2057
    %v2059 = vpop.f32.mrb[0].mxu0
    %v2060 = vpop.f32.mrb[0].mxu0
    %v2061 = vadd.f32 %v1909, %v2060
    %v2062 = vpop.f32.mrb[0].mxu0
    %2063 = vmatprep.mubr.bf16.mxu0 %v1847
    %2064 = vmatmul.mubr.bf16.gmra.mrb[0].mxu0 %v1846
    %v2065 = vpop.f32.mrb[0].mxu0
    %v2066 = vadd.f32 %v1909, %v2065
    %v2067 = vpop.f32.mrb[0].mxu0
    %v2068 = vpop.f32.mrb[0].mxu0
    %v2069 = vadd.f32 %v1909, %v2068
    %v2070 = vpop.f32.mrb[0].mxu0
    %2071 = vmatprep.mubr.bf16.mxu0 %v1849
    %2072 = vmatmul.mubr.bf16.gmra.mrb[0].mxu0 %v1848
    %v2073 = vpop.f32.mrb[0].mxu0
    %v2074 = vadd.f32 %v1909, %v2073
    %v2075 = vpop.f32.mrb[0].mxu0
    %v2076 = vpop.f32.mrb[0].mxu0
    %v2077 = vadd.f32 %v1909, %v2076
    %v2078 = vpop.f32.mrb[0].mxu0
    %2079 = vmatprep.mubr.bf16.mxu0 %v1851
    %2080 = vmatmul.mubr.bf16.gmra.mrb[0].mxu0 %v1850
    %v2081 = vpop.f32.mrb[0].mxu0
    %v2082 = vadd.f32 %v1909, %v2081
    %v2083 = vpop.f32.mrb[0].mxu0
    %v2084 = vpop.f32.mrb[0].mxu0
    %v2085 = vadd.f32 %v1909, %v2084
    %v2086 = vpop.f32.mrb[0].mxu0
    %2087 = vmatprep.mubr.bf16.mxu0 %v1853
    %2088 = vmatmul.mubr.bf16.gmra.mrb[0].mxu0 %v1852
    %v2089 = vpop.f32.mrb[0].mxu0
    %v2090 = vadd.f32 %v1909, %v2089
    %v2091 = vpop.f32.mrb[0].mxu0
    %v2092 = vpop.f32.mrb[0].mxu0
    %v2093 = vadd.f32 %v1909, %v2092
    %v2094 = vpop.f32.mrb[0].mxu0
    %2095 = vmatprep.mubr.bf16.mxu0 %v1855
    %2096 = vmatmul.mubr.bf16.gmra.mrb[0].mxu0 %v1854
    %v2097 = vpop.f32.mrb[0].mxu0
    %v2098 = vadd.f32 %v1909, %v2097
    %v2099 = vpop.f32.mrb[0].mxu0
    %v2100 = vpop.f32.mrb[0].mxu0
    %v2101 = vadd.f32 %v1909, %v2100
    %v2102 = vpop.f32.mrb[0].mxu0
    %2103 = vmatprep.mubr.bf16.mxu0 %v1857
    %2104 = vmatmul.mubr.bf16.gmra.mrb[0].mxu0 %v1856
    %v2105 = vpop.f32.mrb[0].mxu0
    %v2106 = vadd.f32 %v1909, %v2105
    %v2107 = vpop.f32.mrb[0].mxu0
    %v2108 = vpop.f32.mrb[0].mxu0
    %v2109 = vadd.f32 %v1909, %v2108
    %v2110 = vpop.f32.mrb[0].mxu0
    %2111 = vmatprep.mubr.bf16.mxu0 %v1859
    %2112 = vmatmul.mubr.bf16.gmra.mrb[0].mxu0 %v1858
    %v2113 = vpop.f32.mrb[0].mxu0
    %v2114 = vadd.f32 %v1909, %v2113
    %v2115 = vpop.f32.mrb[0].mxu0
    %v2116 = vpop.f32.mrb[0].mxu0
    %v2117 = vadd.f32 %v1909, %v2116
    %v2118 = vpop.f32.mrb[0].mxu0
    %2119 = vmatprep.mubr.bf16.mxu0 %v1861
    %2120 = vmatmul.mubr.bf16.gmra.mrb[0].mxu0 %v1860
    %v2121 = vpop.f32.mrb[0].mxu0
    %v2122 = vadd.f32 %v1909, %v2121
    %v2123 = vpop.f32.mrb[0].mxu0
    %v2124 = vpop.f32.mrb[0].mxu0
    %v2125 = vadd.f32 %v1909, %v2124
    %v2126 = vpop.f32.mrb[0].mxu0
    %2127 = vmatprep.mubr.bf16.mxu0 %v1863
    %2128 = vmatmul.mubr.bf16.gmra.mrb[0].mxu0 %v1862
    %v2129 = vpop.f32.mrb[0].mxu0
    %v2130 = vadd.f32 %v1909, %v2129
    %v2131 = vpop.f32.mrb[0].mxu0
    %v2132 = vpop.f32.mrb[0].mxu0
    %v2133 = vadd.f32 %v1909, %v2132
    %v2134 = vpop.f32.mrb[0].mxu0
    %2135 = vmatprep.mubr.bf16.mxu0 %v1865
    %2136 = vmatmul.mubr.bf16.gmra.mrb[0].mxu0 %v1864
    %v2137 = vpop.f32.mrb[0].mxu0
    %v2138 = vadd.f32 %v1909, %v2137
    %v2139 = vpop.f32.mrb[0].mxu0
    %v2140 = vpop.f32.mrb[0].mxu0
    %v2141 = vadd.f32 %v1909, %v2140
    %v2142 = vpop.f32.mrb[0].mxu0
    %2143 = vmatprep.mubr.bf16.mxu0 %v1867
    %2144 = vmatmul.mubr.bf16.gmra.mrb[0].mxu0 %v1866
    %v2145 = vpop.f32.mrb[0].mxu0
    %v2146 = vadd.f32 %v1909, %v2145
    %v2147 = vpop.f32.mrb[0].mxu0
    %v2148 = vpop.f32.mrb[0].mxu0
    %v2149 = vadd.f32 %v1909, %v2148
    %v2150 = vpop.f32.mrb[0].mxu0
    %2151 = vmatprep.mubr.bf16.mxu0 %v1869
    %2152 = vmatmul.mubr.bf16.gmra.mrb[0].mxu0 %v1868
    %v2153 = vpop.f32.mrb[0].mxu0
    %v2154 = vadd.f32 %v1909, %v2153
    %v2155 = vpop.f32.mrb[0].mxu0
    %v2156 = vpop.f32.mrb[0].mxu0
    %v2157 = vadd.f32 %v1909, %v2156
    %v2158 = vpop.f32.mrb[0].mxu0
    %2159 = vmatprep.mubr.bf16.mxu0 %v1871
    %2160 = vmatmul.mubr.bf16.gmra.mrb[0].mxu0 %v1870
    %v2161 = vpop.f32.mrb[0].mxu0
    %v2162 = vadd.f32 %v1909, %v2161
    %v2163 = vpop.f32.mrb[0].mxu0
    %v2164 = vpop.f32.mrb[0].mxu0
    %v2165 = vadd.f32 %v1909, %v2164
    %v2166 = vpop.f32.mrb[0].mxu0
    %2167 = vdwg.mxu0
    %v2168 = vmax.f32 %v2042, 0.0
    %v2169 = vmax.f32 %v2045, 0.0
    %v2170 = vmax.f32 %v2050, 0.0
    %v2171 = vmax.f32 %v2053, 0.0
    %v2172 = vmax.f32 %v2058, 0.0
    %v2173 = vmax.f32 %v2061, 0.0
    %v2174 = vmax.f32 %v2066, 0.0
    %v2175 = vmax.f32 %v2069, 0.0
    %v2176 = vmax.f32 %v2074, 0.0
    %v2177 = vmax.f32 %v2077, 0.0
    %v2178 = vmax.f32 %v2082, 0.0
    %v2179 = vmax.f32 %v2085, 0.0
    %v2180 = vmax.f32 %v2090, 0.0
    %v2181 = vmax.f32 %v2093, 0.0
    %v2182 = vmax.f32 %v2098, 0.0
    %v2183 = vmax.f32 %v2101, 0.0
    %v2184 = vmax.f32 %v2106, 0.0
    %v2185 = vmax.f32 %v2109, 0.0
    %v2186 = vmax.f32 %v2114, 0.0
    %v2187 = vmax.f32 %v2117, 0.0
    %v2188 = vmax.f32 %v2122, 0.0
    %v2189 = vmax.f32 %v2125, 0.0
    %v2190 = vmax.f32 %v2130, 0.0
    %v2191 = vmax.f32 %v2133, 0.0
    %v2192 = vmax.f32 %v2138, 0.0
    %v2193 = vmax.f32 %v2141, 0.0
    %v2194 = vmax.f32 %v2146, 0.0
    %v2195 = vmax.f32 %v2149, 0.0
    %v2196 = vmax.f32 %v2154, 0.0
    %v2197 = vmax.f32 %v2157, 0.0
    %v2198 = vmax.f32 %v2162, 0.0
    %v2199 = vmax.f32 %v2165, 0.0
    %v2200 = vpack.c.bf16 %v2169, %v2168
    %v2201 = vpack.c.bf16 %v2171, %v2170
    %v2202 = vpack.c.bf16 %v2173, %v2172
    %v2203 = vpack.c.bf16 %v2175, %v2174
    %v2204 = vpack.c.bf16 %v2177, %v2176
    %v2205 = vpack.c.bf16 %v2179, %v2178
    %v2206 = vpack.c.bf16 %v2181, %v2180
    %v2207 = vpack.c.bf16 %v2183, %v2182
    %v2208 = vpack.c.bf16 %v2185, %v2184
    %v2209 = vpack.c.bf16 %v2187, %v2186
    %v2210 = vpack.c.bf16 %v2189, %v2188
    %v2211 = vpack.c.bf16 %v2191, %v2190
    %v2212 = vpack.c.bf16 %v2193, %v2192
    %v2213 = vpack.c.bf16 %v2195, %v2194
    %v2214 = vpack.c.bf16 %v2197, %v2196
    %v2215 = vpack.c.bf16 %v2199, %v2198
    %v2216 = vld [vmem:[#allocation6] sm:$0xf]
    %v2217 = vld [vmem:[#allocation6 + $0x4] sm:$0xf]
    %v2218 = vld [vmem:[#allocation6 + $0x8] sm:$0xf]
    %v2219 = vld [vmem:[#allocation6 + $0xc] sm:$0xf]
    %v2220 = vld [vmem:[#allocation6 + $0x10] sm:$0xf]
    %v2221 = vld [vmem:[#allocation6 + $0x14] sm:$0xf]
    %v2222 = vld [vmem:[#allocation6 + $0x18] sm:$0xf]
    %v2223 = vld [vmem:[#allocation6 + $0x1c] sm:$0xf]
    %v2224 = vld [vmem:[#allocation6 + $0x20] sm:$0xf]
    %v2225 = vld [vmem:[#allocation6 + $0x24] sm:$0xf]
    %v2226 = vld [vmem:[#allocation6 + $0x28] sm:$0xf]
    %v2227 = vld [vmem:[#allocation6 + $0x2c] sm:$0xf]
    %v2228 = vld [vmem:[#allocation6 + $0x30] sm:$0xf]
    %v2229 = vld [vmem:[#allocation6 + $0x34] sm:$0xf]
    %v2230 = vld [vmem:[#allocation6 + $0x38] sm:$0xf]
    %v2231 = vld [vmem:[#allocation6 + $0x3c] sm:$0xf]
    %v2232 = vld [vmem:[%s8] sm:$0x1]
    %v2234 = vlaneseq
    %v2235 = vshrl.u32 %v2234, 7
    %v2236 = vsub.s32 0, %v2235
    %v2237 = vrot.slane %v2232, %v2236
    %v2255 = vunpack.c.l.b16 %v2216
    %v2256 = vunpack.c.l.b16 %v2217
    %v2257 = vunpack.c.l.b16 %v2218
    %v2258 = vunpack.c.l.b16 %v2219
    %v2259 = vunpack.c.l.b16 %v2220
    %v2260 = vunpack.c.l.b16 %v2221
    %v2261 = vunpack.c.l.b16 %v2222
    %v2262 = vunpack.c.l.b16 %v2223
    %v2263 = vunpack.c.l.b16 %v2224
    %v2264 = vunpack.c.l.b16 %v2225
    %v2265 = vunpack.c.l.b16 %v2226
    %v2266 = vunpack.c.l.b16 %v2227
    %v2267 = vunpack.c.l.b16 %v2228
    %v2268 = vunpack.c.l.b16 %v2229
    %v2269 = vunpack.c.l.b16 %v2230
    %v2270 = vunpack.c.l.b16 %v2231
    %v2271 = vpack.c.b16 %v2256, %v2255
    %v2272 = vpack.c.b16 %v2258, %v2257
    %v2273 = vpack.c.b16 %v2260, %v2259
    %v2274 = vpack.c.b16 %v2262, %v2261
    %v2275 = vpack.c.b16 %v2264, %v2263
    %v2276 = vpack.c.b16 %v2266, %v2265
    %v2277 = vpack.c.b16 %v2268, %v2267
    %v2278 = vpack.c.b16 %v2270, %v2269
    %2287 = vmatprep.subr.bf16.mxu0 0
    %2288 = vmatpush1.bf16.msra.mxu0 %v2271
    %2289 = vmatprep.subr.bf16.mxu0 0
    %2290 = vmatpush1.bf16.msra.mxu0 %v2272
    %2291 = vmatprep.subr.bf16.mxu0 0
    %2292 = vmatpush1.bf16.msra.mxu0 %v2273
    %2293 = vmatprep.subr.bf16.mxu0 0
    %2294 = vmatpush1.bf16.msra.mxu0 %v2274
    %2295 = vmatprep.subr.bf16.mxu0 0
    %2296 = vmatpush1.bf16.msra.mxu0 %v2275
    %2297 = vmatprep.subr.bf16.mxu0 0
    %2298 = vmatpush1.bf16.msra.mxu0 %v2276
    %2299 = vmatprep.subr.bf16.mxu0 0
    %2300 = vmatpush1.bf16.msra.mxu0 %v2277
    %2301 = vmatprep.subr.bf16.mxu0 0
    %2302 = vmatpush1.bf16.msra.mxu0 %v2278
    %2303 = vmatprep.subr.bf16.mxu0 0
    %2304 = vmatpush1.bf16.msra.mxu0 0
    %2305 = vmatprep.subr.bf16.mxu0 0
    %2306 = vmatpush1.bf16.msra.mxu0 0
    %2307 = vmatprep.subr.bf16.mxu0 0
    %2308 = vmatpush1.bf16.msra.mxu0 0
    %2309 = vmatprep.subr.bf16.mxu0 0
    %2310 = vmatpush1.bf16.msra.mxu0 0
    %2311 = vmatprep.subr.bf16.mxu0 0
    %2312 = vmatpush1.bf16.msra.mxu0 0
    %2313 = vmatprep.subr.bf16.mxu0 0
    %2314 = vmatpush1.bf16.msra.mxu0 0
    %2315 = vmatprep.subr.bf16.mxu0 0
    %2316 = vmatpush1.bf16.msra.mxu0 0
    %2317 = vmatprep.subr.bf16.mxu0 0
    %2318 = vmatpush1.bf16.msra.mxu0 0
    %2319 = vmatprep.mubr.bf16.mxu0 0
    %2320 = vmatmul.mubr.bf16.gmra.mrb[0].mxu0 %v2200
    %v2321 = vpop.f32.mrb[0].mxu0
    %v2322 = vadd.f32 %v2237, %v2321
    %v2323 = vpop.f32.mrb[0].mxu0
    %v2324 = vpop.f32.mrb[0].mxu0
    %v2325 = vadd.f32 %v2237, %v2324
    %v2326 = vpop.f32.mrb[0].mxu0
    %2327 = vmatprep.mubr.bf16.mxu0 0
    %2328 = vmatmul.mubr.bf16.gmra.mrb[0].mxu0 %v2201
    %v2329 = vpop.f32.mrb[0].mxu0
    %v2330 = vadd.f32 %v2237, %v2329
    %v2331 = vpop.f32.mrb[0].mxu0
    %v2332 = vpop.f32.mrb[0].mxu0
    %v2333 = vadd.f32 %v2237, %v2332
    %v2334 = vpop.f32.mrb[0].mxu0
    %2335 = vmatprep.mubr.bf16.mxu0 0
    %2336 = vmatmul.mubr.bf16.gmra.mrb[0].mxu0 %v2202
    %v2337 = vpop.f32.mrb[0].mxu0
    %v2338 = vadd.f32 %v2237, %v2337
    %v2339 = vpop.f32.mrb[0].mxu0
    %v2340 = vpop.f32.mrb[0].mxu0
    %v2341 = vadd.f32 %v2237, %v2340
    %v2342 = vpop.f32.mrb[0].mxu0
    %2343 = vmatprep.mubr.bf16.mxu0 0
    %2344 = vmatmul.mubr.bf16.gmra.mrb[0].mxu0 %v2203
    %v2345 = vpop.f32.mrb[0].mxu0
    %v2346 = vadd.f32 %v2237, %v2345
    %v2347 = vpop.f32.mrb[0].mxu0
    %v2348 = vpop.f32.mrb[0].mxu0
    %v2349 = vadd.f32 %v2237, %v2348
    %v2350 = vpop.f32.mrb[0].mxu0
    %2351 = vmatprep.mubr.bf16.mxu0 0
    %2352 = vmatmul.mubr.bf16.gmra.mrb[0].mxu0 %v2204
    %v2353 = vpop.f32.mrb[0].mxu0
    %v2354 = vadd.f32 %v2237, %v2353
    %v2355 = vpop.f32.mrb[0].mxu0
    %v2356 = vpop.f32.mrb[0].mxu0
    %v2357 = vadd.f32 %v2237, %v2356
    %v2358 = vpop.f32.mrb[0].mxu0
    %2359 = vmatprep.mubr.bf16.mxu0 0
    %2360 = vmatmul.mubr.bf16.gmra.mrb[0].mxu0 %v2205
    %v2361 = vpop.f32.mrb[0].mxu0
    %v2362 = vadd.f32 %v2237, %v2361
    %v2363 = vpop.f32.mrb[0].mxu0
    %v2364 = vpop.f32.mrb[0].mxu0
    %v2365 = vadd.f32 %v2237, %v2364
    %v2366 = vpop.f32.mrb[0].mxu0
    %2367 = vmatprep.mubr.bf16.mxu0 0
    %2368 = vmatmul.mubr.bf16.gmra.mrb[0].mxu0 %v2206
    %v2369 = vpop.f32.mrb[0].mxu0
    %v2370 = vadd.f32 %v2237, %v2369
    %v2371 = vpop.f32.mrb[0].mxu0
    %v2372 = vpop.f32.mrb[0].mxu0
    %v2373 = vadd.f32 %v2237, %v2372
    %v2374 = vpop.f32.mrb[0].mxu0
    %2375 = vmatprep.mubr.bf16.mxu0 0
    %2376 = vmatmul.mubr.bf16.gmra.mrb[0].mxu0 %v2207
    %v2377 = vpop.f32.mrb[0].mxu0
    %v2378 = vadd.f32 %v2237, %v2377
    %v2379 = vpop.f32.mrb[0].mxu0
    %v2380 = vpop.f32.mrb[0].mxu0
    %v2381 = vadd.f32 %v2237, %v2380
    %v2382 = vpop.f32.mrb[0].mxu0
    %2383 = vmatprep.mubr.bf16.mxu0 0
    %2384 = vmatmul.mubr.bf16.gmra.mrb[0].mxu0 %v2208
    %v2385 = vpop.f32.mrb[0].mxu0
    %v2386 = vadd.f32 %v2237, %v2385
    %v2387 = vpop.f32.mrb[0].mxu0
    %v2388 = vpop.f32.mrb[0].mxu0
    %v2389 = vadd.f32 %v2237, %v2388
    %v2390 = vpop.f32.mrb[0].mxu0
    %2391 = vmatprep.mubr.bf16.mxu0 0
    %2392 = vmatmul.mubr.bf16.gmra.mrb[0].mxu0 %v2209
    %v2393 = vpop.f32.mrb[0].mxu0
    %v2394 = vadd.f32 %v2237, %v2393
    %v2395 = vpop.f32.mrb[0].mxu0
    %v2396 = vpop.f32.mrb[0].mxu0
    %v2397 = vadd.f32 %v2237, %v2396
    %v2398 = vpop.f32.mrb[0].mxu0
    %2399 = vmatprep.mubr.bf16.mxu0 0
    %2400 = vmatmul.mubr.bf16.gmra.mrb[0].mxu0 %v2210
    %v2401 = vpop.f32.mrb[0].mxu0
    %v2402 = vadd.f32 %v2237, %v2401
    %v2403 = vpop.f32.mrb[0].mxu0
    %v2404 = vpop.f32.mrb[0].mxu0
    %v2405 = vadd.f32 %v2237, %v2404
    %v2406 = vpop.f32.mrb[0].mxu0
    %2407 = vmatprep.mubr.bf16.mxu0 0
    %2408 = vmatmul.mubr.bf16.gmra.mrb[0].mxu0 %v2211
    %v2409 = vpop.f32.mrb[0].mxu0
    %v2410 = vadd.f32 %v2237, %v2409
    %v2411 = vpop.f32.mrb[0].mxu0
    %v2412 = vpop.f32.mrb[0].mxu0
    %v2413 = vadd.f32 %v2237, %v2412
    %v2414 = vpop.f32.mrb[0].mxu0
    %2415 = vmatprep.mubr.bf16.mxu0 0
    %2416 = vmatmul.mubr.bf16.gmra.mrb[0].mxu0 %v2212
    %v2417 = vpop.f32.mrb[0].mxu0
    %v2418 = vadd.f32 %v2237, %v2417
    %v2419 = vpop.f32.mrb[0].mxu0
    %v2420 = vpop.f32.mrb[0].mxu0
    %v2421 = vadd.f32 %v2237, %v2420
    %v2422 = vpop.f32.mrb[0].mxu0
    %2423 = vmatprep.mubr.bf16.mxu0 0
    %2424 = vmatmul.mubr.bf16.gmra.mrb[0].mxu0 %v2213
    %v2425 = vpop.f32.mrb[0].mxu0
    %v2426 = vadd.f32 %v2237, %v2425
    %v2427 = vpop.f32.mrb[0].mxu0
    %v2428 = vpop.f32.mrb[0].mxu0
    %v2429 = vadd.f32 %v2237, %v2428
    %v2430 = vpop.f32.mrb[0].mxu0
    %2431 = vmatprep.mubr.bf16.mxu0 0
    %2432 = vmatmul.mubr.bf16.gmra.mrb[0].mxu0 %v2214
    %v2433 = vpop.f32.mrb[0].mxu0
    %v2434 = vadd.f32 %v2237, %v2433
    %v2435 = vpop.f32.mrb[0].mxu0
    %v2436 = vpop.f32.mrb[0].mxu0
    %v2437 = vadd.f32 %v2237, %v2436
    %v2438 = vpop.f32.mrb[0].mxu0
    %2439 = vmatprep.mubr.bf16.mxu0 0
    %2440 = vmatmul.mubr.bf16.gmra.mrb[0].mxu0 %v2215
    %v2441 = vpop.f32.mrb[0].mxu0
    %v2442 = vadd.f32 %v2237, %v2441
    %v2443 = vpop.f32.mrb[0].mxu0
    %v2444 = vpop.f32.mrb[0].mxu0
    %v2445 = vadd.f32 %v2237, %v2444
    %v2446 = vpop.f32.mrb[0].mxu0
    %2447 = vdwg.mxu0
    %v2448 = vlaneseq
    %v2449 = vand.u32 %v2448, 127
    %vm2450 = vcmp.lt.s32.totalorder %v2449, 4
    %vm2451 = vcmp.eq.s32.totalorder %v2449, 4
    %v2452 = vsel %vm2450, %v2322, -inf
    %v2453 = vsel %vm2450, %v2325, -inf
    %v2454 = vsel %vm2450, %v2330, -inf
    %v2455 = vsel %vm2450, %v2333, -inf
    %v2456 = vsel %vm2450, %v2338, -inf
    %v2457 = vsel %vm2450, %v2341, -inf
    %v2458 = vsel %vm2450, %v2346, -inf
    %v2459 = vsel %vm2450, %v2349, -inf
    %v2460 = vsel %vm2450, %v2354, -inf
    %v2461 = vsel %vm2450, %v2357, -inf
    %v2462 = vsel %vm2450, %v2362, -inf
    %v2463 = vsel %vm2450, %v2365, -inf
    %v2464 = vsel %vm2450, %v2370, -inf
    %v2465 = vsel %vm2450, %v2373, -inf
    %v2466 = vsel %vm2450, %v2378, -inf
    %v2467 = vsel %vm2450, %v2381, -inf
    %v2468 = vsel %vm2450, %v2386, -inf
    %v2469 = vsel %vm2450, %v2389, -inf
    %v2470 = vsel %vm2450, %v2394, -inf
    %v2471 = vsel %vm2450, %v2397, -inf
    %v2472 = vsel %vm2450, %v2402, -inf
    %v2473 = vsel %vm2450, %v2405, -inf
    %v2474 = vsel %vm2450, %v2410, -inf
    %v2475 = vsel %vm2450, %v2413, -inf
    %v2476 = vsel %vm2450, %v2418, -inf
    %v2477 = vsel %vm2450, %v2421, -inf
    %v2478 = vsel %vm2450, %v2426, -inf
    %v2479 = vsel %vm2450, %v2429, -inf
    %v2480 = vsel %vm2450, %v2434, -inf
    %v2481 = vsel %vm2450, %v2437, -inf
    %v2482 = vsel %vm2450, %v2442, -inf
    %v2483 = vsel %vm2450, %v2445, -inf
    %2484 = vmax.xlane.f32.xlu0 %v2452
    %v2485 = vpop.xlane.xlu0 %2484
    %2486 = vmax.xlane.f32.xlu0 %v2453
    %v2487 = vpop.xlane.xlu0 %2486
    %2488 = vmax.xlane.f32.xlu0 %v2454
    %v2489 = vpop.xlane.xlu0 %2488
    %2490 = vmax.xlane.f32.xlu0 %v2455
    %v2491 = vpop.xlane.xlu0 %2490
    %2492 = vmax.xlane.f32.xlu0 %v2456
    %v2493 = vpop.xlane.xlu0 %2492
    %2494 = vmax.xlane.f32.xlu0 %v2457
    %v2495 = vpop.xlane.xlu0 %2494
    %2496 = vmax.xlane.f32.xlu0 %v2458
    %v2497 = vpop.xlane.xlu0 %2496
    %2498 = vmax.xlane.f32.xlu0 %v2459
    %v2499 = vpop.xlane.xlu0 %2498
    %2500 = vmax.xlane.f32.xlu0 %v2460
    %v2501 = vpop.xlane.xlu0 %2500
    %2502 = vmax.xlane.f32.xlu0 %v2461
    %v2503 = vpop.xlane.xlu0 %2502
    %2504 = vmax.xlane.f32.xlu0 %v2462
    %v2505 = vpop.xlane.xlu0 %2504
    %2506 = vmax.xlane.f32.xlu0 %v2463
    %v2507 = vpop.xlane.xlu0 %2506
    %2508 = vmax.xlane.f32.xlu0 %v2464
    %v2509 = vpop.xlane.xlu0 %2508
    %2510 = vmax.xlane.f32.xlu0 %v2465
    %v2511 = vpop.xlane.xlu0 %2510
    %2512 = vmax.xlane.f32.xlu0 %v2466
    %v2513 = vpop.xlane.xlu0 %2512
    %2514 = vmax.xlane.f32.xlu0 %v2467
    %v2515 = vpop.xlane.xlu0 %2514
    %2516 = vmax.xlane.f32.xlu0 %v2468
    %v2517 = vpop.xlane.xlu0 %2516
    %2518 = vmax.xlane.f32.xlu0 %v2469
    %v2519 = vpop.xlane.xlu0 %2518
    %2520 = vmax.xlane.f32.xlu0 %v2470
    %v2521 = vpop.xlane.xlu0 %2520
    %2522 = vmax.xlane.f32.xlu0 %v2471
    %v2523 = vpop.xlane.xlu0 %2522
    %2524 = vmax.xlane.f32.xlu0 %v2472
    %v2525 = vpop.xlane.xlu0 %2524
    %2526 = vmax.xlane.f32.xlu0 %v2473
    %v2527 = vpop.xlane.xlu0 %2526
    %2528 = vmax.xlane.f32.xlu0 %v2474
    %v2529 = vpop.xlane.xlu0 %2528
    %2530 = vmax.xlane.f32.xlu0 %v2475
    %v2531 = vpop.xlane.xlu0 %2530
    %2532 = vmax.xlane.f32.xlu0 %v2476
    %v2533 = vpop.xlane.xlu0 %2532
    %2534 = vmax.xlane.f32.xlu0 %v2477
    %v2535 = vpop.xlane.xlu0 %2534
    %2536 = vmax.xlane.f32.xlu0 %v2478
    %v2537 = vpop.xlane.xlu0 %2536
    %2538 = vmax.xlane.f32.xlu0 %v2479
    %v2539 = vpop.xlane.xlu0 %2538
    %2540 = vmax.xlane.f32.xlu0 %v2480
    %v2541 = vpop.xlane.xlu0 %2540
    %2542 = vmax.xlane.f32.xlu0 %v2481
    %v2543 = vpop.xlane.xlu0 %2542
    %2544 = vmax.xlane.f32.xlu0 %v2482
    %v2545 = vpop.xlane.xlu0 %2544
    %2546 = vmax.xlane.f32.xlu0 %v2483
    %v2547 = vpop.xlane.xlu0 %2546
    %v2548 = vsub.f32 %v2452, %v2485
    %v2549 = vsub.f32 %v2453, %v2487
    %v2550 = vsub.f32 %v2454, %v2489
    %v2551 = vsub.f32 %v2455, %v2491
    %v2552 = vsub.f32 %v2456, %v2493
    %v2553 = vsub.f32 %v2457, %v2495
    %v2554 = vsub.f32 %v2458, %v2497
    %v2555 = vsub.f32 %v2459, %v2499
    %v2556 = vsub.f32 %v2460, %v2501
    %v2557 = vsub.f32 %v2461, %v2503
    %v2558 = vsub.f32 %v2462, %v2505
    %v2559 = vsub.f32 %v2463, %v2507
    %v2560 = vsub.f32 %v2464, %v2509
    %v2561 = vsub.f32 %v2465, %v2511
    %v2562 = vsub.f32 %v2466, %v2513
    %v2563 = vsub.f32 %v2467, %v2515
    %v2564 = vsub.f32 %v2468, %v2517
    %v2565 = vsub.f32 %v2469, %v2519
    %v2566 = vsub.f32 %v2470, %v2521
    %v2567 = vsub.f32 %v2471, %v2523
    %v2568 = vsub.f32 %v2472, %v2525
    %v2569 = vsub.f32 %v2473, %v2527
    %v2570 = vsub.f32 %v2474, %v2529
    %v2571 = vsub.f32 %v2475, %v2531
    %v2572 = vsub.f32 %v2476, %v2533
    %v2573 = vsub.f32 %v2477, %v2535
    %v2574 = vsub.f32 %v2478, %v2537
    %v2575 = vsub.f32 %v2479, %v2539
    %v2576 = vsub.f32 %v2480, %v2541
    %v2577 = vsub.f32 %v2481, %v2543
    %v2578 = vsub.f32 %v2482, %v2545
    %v2579 = vsub.f32 %v2483, %v2547
    %v2580 = vmul.f32 %v2548, 1.442695
    %v2581 = vpow.pop %v2580
    %v2582 = vmul.f32 %v2549, 1.442695
    %v2583 = vpow.pop %v2582
    %v2584 = vmul.f32 %v2550, 1.442695
    %v2585 = vpow.pop %v2584
    %v2586 = vmul.f32 %v2551, 1.442695
    %v2587 = vpow.pop %v2586
    %v2588 = vmul.f32 %v2552, 1.442695
    %v2589 = vpow.pop %v2588
    %v2590 = vmul.f32 %v2553, 1.442695
    %v2591 = vpow.pop %v2590
    %v2592 = vmul.f32 %v2554, 1.442695
    %v2593 = vpow.pop %v2592
    %v2594 = vmul.f32 %v2555, 1.442695
    %v2595 = vpow.pop %v2594
    %v2596 = vmul.f32 %v2556, 1.442695
    %v2597 = vpow.pop %v2596
    %v2598 = vmul.f32 %v2557, 1.442695
    %v2599 = vpow.pop %v2598
    %v2600 = vmul.f32 %v2558, 1.442695
    %v2601 = vpow.pop %v2600
    %v2602 = vmul.f32 %v2559, 1.442695
    %v2603 = vpow.pop %v2602
    %v2604 = vmul.f32 %v2560, 1.442695
    %v2605 = vpow.pop %v2604
    %v2606 = vmul.f32 %v2561, 1.442695
    %v2607 = vpow.pop %v2606
    %v2608 = vmul.f32 %v2562, 1.442695
    %v2609 = vpow.pop %v2608
    %v2610 = vmul.f32 %v2563, 1.442695
    %v2611 = vpow.pop %v2610
    %v2612 = vmul.f32 %v2564, 1.442695
    %v2613 = vpow.pop %v2612
    %v2614 = vmul.f32 %v2565, 1.442695
    %v2615 = vpow.pop %v2614
    %v2616 = vmul.f32 %v2566, 1.442695
    %v2617 = vpow.pop %v2616
    %v2618 = vmul.f32 %v2567, 1.442695
    %v2619 = vpow.pop %v2618
    %v2620 = vmul.f32 %v2568, 1.442695
    %v2621 = vpow.pop %v2620
    %v2622 = vmul.f32 %v2569, 1.442695
    %v2623 = vpow.pop %v2622
    %v2624 = vmul.f32 %v2570, 1.442695
    %v2625 = vpow.pop %v2624
    %v2626 = vmul.f32 %v2571, 1.442695
    %v2627 = vpow.pop %v2626
    %v2628 = vmul.f32 %v2572, 1.442695
    %v2629 = vpow.pop %v2628
    %v2630 = vmul.f32 %v2573, 1.442695
    %v2631 = vpow.pop %v2630
    %v2632 = vmul.f32 %v2574, 1.442695
    %v2633 = vpow.pop %v2632
    %v2634 = vmul.f32 %v2575, 1.442695
    %v2635 = vpow.pop %v2634
    %v2636 = vmul.f32 %v2576, 1.442695
    %v2637 = vpow.pop %v2636
    %v2638 = vmul.f32 %v2577, 1.442695
    %v2639 = vpow.pop %v2638
    %v2640 = vmul.f32 %v2578, 1.442695
    %v2641 = vpow.pop %v2640
    %v2642 = vmul.f32 %v2579, 1.442695
    %v2643 = vpow.pop %v2642
    %2644 = vadd.xlane.f32.xlu0 %v2581
    %v2645 = vpop.xlane.xlu0 %2644
    %2646 = vadd.xlane.f32.xlu0 %v2583
    %v2647 = vpop.xlane.xlu0 %2646
    %2648 = vadd.xlane.f32.xlu0 %v2585
    %v2649 = vpop.xlane.xlu0 %2648
    %2650 = vadd.xlane.f32.xlu0 %v2587
    %v2651 = vpop.xlane.xlu0 %2650
    %2652 = vadd.xlane.f32.xlu0 %v2589
    %v2653 = vpop.xlane.xlu0 %2652
    %2654 = vadd.xlane.f32.xlu0 %v2591
    %v2655 = vpop.xlane.xlu0 %2654
    %2656 = vadd.xlane.f32.xlu0 %v2593
    %v2657 = vpop.xlane.xlu0 %2656
    %2658 = vadd.xlane.f32.xlu0 %v2595
    %v2659 = vpop.xlane.xlu0 %2658
    %2660 = vadd.xlane.f32.xlu0 %v2597
    %v2661 = vpop.xlane.xlu0 %2660
    %2662 = vadd.xlane.f32.xlu0 %v2599
    %v2663 = vpop.xlane.xlu0 %2662
    %2664 = vadd.xlane.f32.xlu0 %v2601
    %v2665 = vpop.xlane.xlu0 %2664
    %2666 = vadd.xlane.f32.xlu0 %v2603
    %v2667 = vpop.xlane.xlu0 %2666
    %2668 = vadd.xlane.f32.xlu0 %v2605
    %v2669 = vpop.xlane.xlu0 %2668
    %2670 = vadd.xlane.f32.xlu0 %v2607
    %v2671 = vpop.xlane.xlu0 %2670
    %2672 = vadd.xlane.f32.xlu0 %v2609
    %v2673 = vpop.xlane.xlu0 %2672
    %2674 = vadd.xlane.f32.xlu0 %v2611
    %v2675 = vpop.xlane.xlu0 %2674
    %2676 = vadd.xlane.f32.xlu0 %v2613
    %v2677 = vpop.xlane.xlu0 %2676
    %2678 = vadd.xlane.f32.xlu0 %v2615
    %v2679 = vpop.xlane.xlu0 %2678
    %2680 = vadd.xlane.f32.xlu0 %v2617
    %v2681 = vpop.xlane.xlu0 %2680
    %2682 = vadd.xlane.f32.xlu0 %v2619
    %v2683 = vpop.xlane.xlu0 %2682
    %2684 = vadd.xlane.f32.xlu0 %v2621
    %v2685 = vpop.xlane.xlu0 %2684
    %2686 = vadd.xlane.f32.xlu0 %v2623
    %v2687 = vpop.xlane.xlu0 %2686
    %2688 = vadd.xlane.f32.xlu0 %v2625
    %v2689 = vpop.xlane.xlu0 %2688
    %2690 = vadd.xlane.f32.xlu0 %v2627
    %v2691 = vpop.xlane.xlu0 %2690
    %2692 = vadd.xlane.f32.xlu0 %v2629
    %v2693 = vpop.xlane.xlu0 %2692
    %2694 = vadd.xlane.f32.xlu0 %v2631
    %v2695 = vpop.xlane.xlu0 %2694
    %2696 = vadd.xlane.f32.xlu0 %v2633
    %v2697 = vpop.xlane.xlu0 %2696
    %2698 = vadd.xlane.f32.xlu0 %v2635
    %v2699 = vpop.xlane.xlu0 %2698
    %2700 = vadd.xlane.f32.xlu0 %v2637
    %v2701 = vpop.xlane.xlu0 %2700
    %2702 = vadd.xlane.f32.xlu0 %v2639
    %v2703 = vpop.xlane.xlu0 %2702
    %2704 = vadd.xlane.f32.xlu0 %v2641
    %v2705 = vpop.xlane.xlu0 %2704
    %2706 = vadd.xlane.f32.xlu0 %v2643
    %v2707 = vpop.xlane.xlu0 %2706
    %v2708 = vrcp.pop %v2645
    %v2709 = vmul.f32 1.0, %v2708
    %v2710 = vrcp.pop %v2647
    %v2711 = vmul.f32 1.0, %v2710
    %v2712 = vrcp.pop %v2649
    %v2713 = vmul.f32 1.0, %v2712
    %v2714 = vrcp.pop %v2651
    %v2715 = vmul.f32 1.0, %v2714
    %v2716 = vrcp.pop %v2653
    %v2717 = vmul.f32 1.0, %v2716
    %v2718 = vrcp.pop %v2655
    %v2719 = vmul.f32 1.0, %v2718
    %v2720 = vrcp.pop %v2657
    %v2721 = vmul.f32 1.0, %v2720
    %v2722 = vrcp.pop %v2659
    %v2723 = vmul.f32 1.0, %v2722
    %v2724 = vrcp.pop %v2661
    %v2725 = vmul.f32 1.0, %v2724
    %v2726 = vrcp.pop %v2663
    %v2727 = vmul.f32 1.0, %v2726
    %v2728 = vrcp.pop %v2665
    %v2729 = vmul.f32 1.0, %v2728
    %v2730 = vrcp.pop %v2667
    %v2731 = vmul.f32 1.0, %v2730
    %v2732 = vrcp.pop %v2669
    %v2733 = vmul.f32 1.0, %v2732
    %v2734 = vrcp.pop %v2671
    %v2735 = vmul.f32 1.0, %v2734
    %v2736 = vrcp.pop %v2673
    %v2737 = vmul.f32 1.0, %v2736
    %v2738 = vrcp.pop %v2675
    %v2739 = vmul.f32 1.0, %v2738
    %v2740 = vrcp.pop %v2677
    %v2741 = vmul.f32 1.0, %v2740
    %v2742 = vrcp.pop %v2679
    %v2743 = vmul.f32 1.0, %v2742
    %v2744 = vrcp.pop %v2681
    %v2745 = vmul.f32 1.0, %v2744
    %v2746 = vrcp.pop %v2683
    %v2747 = vmul.f32 1.0, %v2746
    %v2748 = vrcp.pop %v2685
    %v2749 = vmul.f32 1.0, %v2748
    %v2750 = vrcp.pop %v2687
    %v2751 = vmul.f32 1.0, %v2750
    %v2752 = vrcp.pop %v2689
    %v2753 = vmul.f32 1.0, %v2752
    %v2754 = vrcp.pop %v2691
    %v2755 = vmul.f32 1.0, %v2754
    %v2756 = vrcp.pop %v2693
    %v2757 = vmul.f32 1.0, %v2756
    %v2758 = vrcp.pop %v2695
    %v2759 = vmul.f32 1.0, %v2758
    %v2760 = vrcp.pop %v2697
    %v2761 = vmul.f32 1.0, %v2760
    %v2762 = vrcp.pop %v2699
    %v2763 = vmul.f32 1.0, %v2762
    %v2764 = vrcp.pop %v2701
    %v2765 = vmul.f32 1.0, %v2764
    %v2766 = vrcp.pop %v2703
    %v2767 = vmul.f32 1.0, %v2766
    %v2768 = vrcp.pop %v2705
    %v2769 = vmul.f32 1.0, %v2768
    %v2770 = vrcp.pop %v2707
    %v2771 = vmul.f32 1.0, %v2770
    %v2772 = vmul.f32 %v2581, %v2709
    %v2773 = vmul.f32 %v2583, %v2711
    %v2774 = vmul.f32 %v2585, %v2713
    %v2775 = vmul.f32 %v2587, %v2715
    %v2776 = vmul.f32 %v2589, %v2717
    %v2777 = vmul.f32 %v2591, %v2719
    %v2778 = vmul.f32 %v2593, %v2721
    %v2779 = vmul.f32 %v2595, %v2723
    %v2780 = vmul.f32 %v2597, %v2725
    %v2781 = vmul.f32 %v2599, %v2727
    %v2782 = vmul.f32 %v2601, %v2729
    %v2783 = vmul.f32 %v2603, %v2731
    %v2784 = vmul.f32 %v2605, %v2733
    %v2785 = vmul.f32 %v2607, %v2735
    %v2786 = vmul.f32 %v2609, %v2737
    %v2787 = vmul.f32 %v2611, %v2739
    %v2788 = vmul.f32 %v2613, %v2741
    %v2789 = vmul.f32 %v2615, %v2743
    %v2790 = vmul.f32 %v2617, %v2745
    %v2791 = vmul.f32 %v2619, %v2747
    %v2792 = vmul.f32 %v2621, %v2749
    %v2793 = vmul.f32 %v2623, %v2751
    %v2794 = vmul.f32 %v2625, %v2753
    %v2795 = vmul.f32 %v2627, %v2755
    %v2796 = vmul.f32 %v2629, %v2757
    %v2797 = vmul.f32 %v2631, %v2759
    %v2798 = vmul.f32 %v2633, %v2761
    %v2799 = vmul.f32 %v2635, %v2763
    %v2800 = vmul.f32 %v2637, %v2765
    %v2801 = vmul.f32 %v2639, %v2767
    %v2802 = vmul.f32 %v2641, %v2769
    %v2803 = vmul.f32 %v2643, %v2771
    %v2804 = vsel %vm2451, %v2322, %v2772
    %v2805 = vsel %vm2451, %v2325, %v2773
    %v2806 = vsel %vm2451, %v2330, %v2774
    %v2807 = vsel %vm2451, %v2333, %v2775
    %v2808 = vsel %vm2451, %v2338, %v2776
    %v2809 = vsel %vm2451, %v2341, %v2777
    %v2810 = vsel %vm2451, %v2346, %v2778
    %v2811 = vsel %vm2451, %v2349, %v2779
    %v2812 = vsel %vm2451, %v2354, %v2780
    %v2813 = vsel %vm2451, %v2357, %v2781
    %v2814 = vsel %vm2451, %v2362, %v2782
    %v2815 = vsel %vm2451, %v2365, %v2783
    %v2816 = vsel %vm2451, %v2370, %v2784
    %v2817 = vsel %vm2451, %v2373, %v2785
    %v2818 = vsel %vm2451, %v2378, %v2786
    %v2819 = vsel %vm2451, %v2381, %v2787
    %v2820 = vsel %vm2451, %v2386, %v2788
    %v2821 = vsel %vm2451, %v2389, %v2789
    %v2822 = vsel %vm2451, %v2394, %v2790
    %v2823 = vsel %vm2451, %v2397, %v2791
    %v2824 = vsel %vm2451, %v2402, %v2792
    %v2825 = vsel %vm2451, %v2405, %v2793
    %v2826 = vsel %vm2451, %v2410, %v2794
    %v2827 = vsel %vm2451, %v2413, %v2795
    %v2828 = vsel %vm2451, %v2418, %v2796
    %v2829 = vsel %vm2451, %v2421, %v2797
    %v2830 = vsel %vm2451, %v2426, %v2798
    %v2831 = vsel %vm2451, %v2429, %v2799
    %v2832 = vsel %vm2451, %v2434, %v2800
    %v2833 = vsel %vm2451, %v2437, %v2801
    %v2834 = vsel %vm2451, %v2442, %v2802
    %v2835 = vsel %vm2451, %v2445, %v2803
    %vm2836 = vcmask 64512
    %2837 = vst.msk [vmem:[%s9] sm:$0xff] %vm2836, %v2804
    %2838 = vst.msk [vmem:[%s9 + $0x8] sm:$0xff] %vm2836, %v2805
    %2839 = vst.msk [vmem:[%s9 + $0x10] sm:$0xff] %vm2836, %v2806
    %2840 = vst.msk [vmem:[%s9 + $0x18] sm:$0xff] %vm2836, %v2807
    %2841 = vst.msk [vmem:[%s9 + $0x20] sm:$0xff] %vm2836, %v2808
    %2842 = vst.msk [vmem:[%s9 + $0x28] sm:$0xff] %vm2836, %v2809
    %2843 = vst.msk [vmem:[%s9 + $0x30] sm:$0xff] %vm2836, %v2810
    %2844 = vst.msk [vmem:[%s9 + $0x38] sm:$0xff] %vm2836, %v2811
    %2845 = vst.msk [vmem:[%s9 + $0x40] sm:$0xff] %vm2836, %v2812
    %2846 = vst.msk [vmem:[%s9 + $0x48] sm:$0xff] %vm2836, %v2813
    %2847 = vst.msk [vmem:[%s9 + $0x50] sm:$0xff] %vm2836, %v2814
    %2848 = vst.msk [vmem:[%s9 + $0x58] sm:$0xff] %vm2836, %v2815
    %2849 = vst.msk [vmem:[%s9 + $0x60] sm:$0xff] %vm2836, %v2816
    %2850 = vst.msk [vmem:[%s9 + $0x68] sm:$0xff] %vm2836, %v2817
    %2851 = vst.msk [vmem:[%s9 + $0x70] sm:$0xff] %vm2836, %v2818
    %2852 = vst.msk [vmem:[%s9 + $0x78] sm:$0xff] %vm2836, %v2819
    %2853 = vst.msk [vmem:[%s9 + $0x80] sm:$0xff] %vm2836, %v2820
    %2854 = vst.msk [vmem:[%s9 + $0x88] sm:$0xff] %vm2836, %v2821
    %2855 = vst.msk [vmem:[%s9 + $0x90] sm:$0xff] %vm2836, %v2822
    %2856 = vst.msk [vmem:[%s9 + $0x98] sm:$0xff] %vm2836, %v2823
    %2857 = vst.msk [vmem:[%s9 + $0xa0] sm:$0xff] %vm2836, %v2824
    %2858 = vst.msk [vmem:[%s9 + $0xa8] sm:$0xff] %vm2836, %v2825
    %2859 = vst.msk [vmem:[%s9 + $0xb0] sm:$0xff] %vm2836, %v2826
    %2860 = vst.msk [vmem:[%s9 + $0xb8] sm:$0xff] %vm2836, %v2827
    %2861 = vst.msk [vmem:[%s9 + $0xc0] sm:$0xff] %vm2836, %v2828
    %2862 = vst.msk [vmem:[%s9 + $0xc8] sm:$0xff] %vm2836, %v2829
    %2863 = vst.msk [vmem:[%s9 + $0xd0] sm:$0xff] %vm2836, %v2830
    %2864 = vst.msk [vmem:[%s9 + $0xd8] sm:$0xff] %vm2836, %v2831
    %2865 = vst.msk [vmem:[%s9 + $0xe0] sm:$0xff] %vm2836, %v2832
    %2866 = vst.msk [vmem:[%s9 + $0xe8] sm:$0xff] %vm2836, %v2833
    %2867 = vst.msk [vmem:[%s9 + $0xf0] sm:$0xff] %vm2836, %v2834
    %2868 = vst.msk [vmem:[%s9 + $0xf8] sm:$0xff] %vm2836, %v2835
    // Predicated region
    $region50: #{actor_critic_forward.1} parent=1 // pred_check
      _
    $region51: #{actor_critic_forward.1} parent=1 // pred_check_branch
      %2870 = sbr.rel (0) target = $region53
    $region52: #{actor_critic_forward.1} parent=1 // pred_region
      _
    $region53: #{actor_critic_forward.1} parent=1 // pred_fallthru
      _
    // Predicated region
    $region54: #{actor_critic_forward.1} parent=1 // pred_check
      _
    $region55: #{actor_critic_forward.1} parent=1 // pred_check_branch
      %2872 = sbr.rel (0) target = $region57
    $region56: #{actor_critic_forward.1} parent=1 // pred_region
      _
    $region57: #{actor_critic_forward.1} parent=1 // pred_fallthru
      _
    %2873 = vsyncpa [#allocation3], 1
    %2874 = vsyncpa [#allocation5], 1

</llo_original>
